<compile_context>
chip_gen: v5e
topology: v5e:2x2
jax: 0.10.0
libtpu: 0.0.40
codegen_flags: <defaults>
</compile_context>

<pallas_src>
import jax
import jax.numpy as jnp
import numpy as np
from jax import lax
from jax.experimental import pallas as pl
from jax.experimental.pallas import tpu as pltpu

# Matmul operand dtype (HBM storage + MXU feed). bf16 = native MXU rate on
# v6e/v7x and half the DMA bytes; accumulation is always f32.
MATMUL_DTYPE = jnp.bfloat16


def bottleneck_kernel(x_ref, w1_ref, b1_ref, w2_ref, b2_ref, w3_ref, b3_ref,
                      o_ref):
    """One batch image of the fused bottleneck.

    x_ref : (1, H, W, Cin)   input image (NHWC, bf16)
    w1_ref: (Cin, P)         conv1 1x1 weight, BN1 scale folded in (bf16)
    w2_ref: (3P, 3P)         conv2 3x3 block weight, BN2 scale folded in:
                             w2_ref[kx*P+i, ky*P+o] = w2[ky,kx,i,o]*s2[o]
    w3_ref: (P, Cout)        conv3 1x1 weight, BN3 scale folded in (bf16)
    b*_ref: (1, C)           folded BatchNorm biases (f32)
    o_ref : (1, H, W, Cout)  output image (f32)
    """
    _, H, W, Cin = x_ref.shape
    P = w1_ref.shape[1]
    Cout = w3_ref.shape[1]
    HW = H * W
    cd = MATMUL_DTYPE

    x = x_ref[...].reshape(HW, Cin)                       # (HW, Cin) bf16

    # ---- stage 1: conv1 (1x1, scale folded) + bias + ReLU -------------------
    a1 = jnp.dot(x, w1_ref[...], preferred_element_type=jnp.float32)
    a1 = jnp.maximum(a1 + b1_ref[...], 0.0)               # (HW, P) f32

    # Flat-row boundary masks implementing the 3x3 zero padding.
    r = lax.broadcasted_iota(jnp.int32, (HW, 1), 0)
    w_pos = r % W
    not_w_first = w_pos != 0                              # w-1 exists
    not_w_last = w_pos != (W - 1)                         # w+1 exists
    not_h_first = r >= W                                  # h-1 exists
    not_h_last = r < (H - 1) * W                          # h+1 exists

    # ---- stage 2: conv2 (3x3, pad 1) as ONE matmul --------------------------
    # kx taps stacked on the input channel dim via sublane rolls (+ border
    # masks); ky taps stacked on the weight output dim, shifted afterwards.
    x_m = jnp.where(not_w_first, pltpu.roll(a1, shift=1, axis=0), 0.0)      # a1[h, w-1]
    x_p = jnp.where(not_w_last, pltpu.roll(a1, shift=HW - 1, axis=0), 0.0)  # a1[h, w+1]
    x3 = jnp.concatenate([x_m, a1, x_p], axis=-1).astype(cd)                # (HW, 3P)

    y = jnp.dot(x3, w2_ref[...], preferred_element_type=jnp.float32)        # (HW, 3P)

    # ky chunk k contributes at row offset (k-1)*W; W is 8-aligned -> cheap rolls.
    y_top = jnp.where(not_h_first, pltpu.roll(y[:, 0:P], shift=W, axis=0), 0.0)
    y_mid = y[:, P:2 * P]
    y_bot = jnp.where(not_h_last, pltpu.roll(y[:, 2 * P:3 * P], shift=HW - W, axis=0), 0.0)
    a2 = jnp.maximum(y_top + y_mid + y_bot + b2_ref[...], 0.0)              # (HW, P) f32

    # ---- stage 3: conv3 (1x1) + bias + identity residual + ReLU -------------
    # TODO(synk): at real ResNet sizes, batch conv3 over more rows so the K=P
    #             contraction amortizes better on the 128/256-deep MXU.
    out3 = jnp.dot(a2.astype(cd), w3_ref[...], preferred_element_type=jnp.float32)
    out3 = out3 + b3_ref[...] + x.astype(jnp.float32)     # reuse loaded x as residual
    o_ref[...] = jnp.maximum(out3, 0.0).reshape(1, H, W, Cout)


def prepare_params(params):
    """Host-side prep: fold BN scales into conv weights, build the (3P, 3P)
    conv2 block weight, cast matmul operands to MATMUL_DTYPE."""
    (w1, s1, b1, w2, s2, b2, w3, s3, b3) = params
    P = w1.shape[1]
    w1s = (w1 * s1).astype(MATMUL_DTYPE)                  # (Cin, P)
    w2s = w2 * s2[0]                                      # (3,3,P,P) [ky,kx,i,o]
    # Block matrix: rows = kx*P + i, cols = ky*P + o
    w2big = jnp.transpose(w2s, (1, 2, 0, 3)).reshape(3 * P, 3 * P).astype(MATMUL_DTYPE)
    w3s = (w3 * s3).astype(MATMUL_DTYPE)                  # (P, Cout)
    return (w1s, b1.astype(jnp.float32), w2big, b2.astype(jnp.float32),
            w3s, b3.astype(jnp.float32))


def bottleneck_pallas_nhwc(x_nhwc, prepared):
    """NHWC entry point (preferred: no layout transposes)."""
    (w1s, b1, w2big, b2, w3s, b3) = prepared
    N, H, W, Cin = x_nhwc.shape
    P = w1s.shape[1]
    Cout = w3s.shape[1]
    assert Cin == Cout == 4 * P, "identity residual requires inplanes == 4*planes"
    assert (H * W) % 8 == 0

    x_bf16 = x_nhwc.astype(MATMUL_DTYPE)                  # bf16 in HBM -> half the DMA

    def const(shape):                                     # resident weights / biases
        return pl.BlockSpec(shape, lambda n: tuple(0 for _ in shape))

    grid_spec = pltpu.PrefetchScalarGridSpec(
        num_scalar_prefetch=0,
        grid=(N,),                                        # N>=2 -> both v7x TCs busy
        in_specs=[
            pl.BlockSpec((1, H, W, Cin), lambda n: (n, 0, 0, 0)),
            const((Cin, P)), const((1, P)),
            const((3 * P, 3 * P)), const((1, P)),
            const((P, Cout)), const((1, Cout)),
        ],
        out_specs=pl.BlockSpec((1, H, W, Cout), lambda n: (n, 0, 0, 0)),
    )

    # Live VMEM: 2x 64 KiB input tile + 2x 128 KiB output tile + ~44 KiB
    # weights + <1 MiB temporaries  => < 2 MiB.  16 MiB leaves ample slack and
    # is safe on every generation (v7x has only 64 MiB physical VMEM).
    return pl.pallas_call(
        bottleneck_kernel,
        out_shape=jax.ShapeDtypeStruct((N, H, W, Cout), jnp.float32),
        grid_spec=grid_spec,
        compiler_params=pltpu.CompilerParams(
            dimension_semantics=("parallel",),
            vmem_limit_bytes=16 * 1024 * 1024),
    )(x_bf16, w1s, b1, w2big, b2, w3s, b3)


@jax.jit
def bottleneck_pallas(x_nchw, prepared):
    """PyTorch-compatible NCHW wrapper. In an NHWC pipeline call
    bottleneck_pallas_nhwc directly to avoid the two HBM transposes."""
    x_nhwc = jnp.transpose(x_nchw, (0, 2, 3, 1))
    out = bottleneck_pallas_nhwc(x_nhwc, prepared)
    return jnp.transpose(out, (0, 3, 1, 2))


def make_params(key, inplanes, planes, eps=1e-5):
    """Deterministic synthetic parameters. BN folded to scale/bias."""
    expansion = 4
    keys = jax.random.split(key, 16)

    def bn_fold(kg, kb, km, kv, c):
        gamma = 1.0 + 0.1 * jax.random.normal(kg, (c,), jnp.float32)
        beta = 0.1 * jax.random.normal(kb, (c,), jnp.float32)
        mean = 0.1 * jax.random.normal(km, (c,), jnp.float32)
        var = 1.0 + 0.1 * jax.random.uniform(kv, (c,), jnp.float32)
        scale = gamma / jnp.sqrt(var + eps)
        bias = beta - mean * scale
        return scale.reshape(1, c), bias.reshape(1, c)

    # conv1: 1x1, inplanes -> planes  (stored as (Cin, Cout) matmul weight)
    w1 = 0.1 * jax.random.normal(keys[0], (inplanes, planes), jnp.float32)
    s1, b1 = bn_fold(keys[1], keys[2], keys[3], keys[4], planes)

    # conv2: 3x3, planes -> planes, HWIO
    w2 = 0.1 * jax.random.normal(keys[5], (3, 3, planes, planes), jnp.float32)
    s2, b2 = bn_fold(keys[6], keys[7], keys[8], keys[9], planes)

    # conv3: 1x1, planes -> planes*expansion
    w3 = 0.1 * jax.random.normal(keys[10], (planes, planes * expansion),
                                 jnp.float32)
    s3, b3 = bn_fold(keys[11], keys[12], keys[13], keys[14],
                     planes * expansion)

    return (w1, s1, b1, w2, s2, b2, w3, s3, b3)


def bottleneck_reference(x_nchw, params):
    """Pure-JAX f32 reference (same folded-BN semantics) for validation."""
    (w1, s1, b1, w2, s2, b2, w3, s3, b3) = params
    x = jnp.transpose(x_nchw, (0, 2, 3, 1))  # NHWC

    def conv1x1(x, w):
        return jnp.einsum('nhwc,co->nhwo', x, w)

    o = jnp.maximum(conv1x1(x, w1) * s1[0] + b1[0], 0.0)
    o = jax.lax.conv_general_dilated(
        o, w2, window_strides=(1, 1), padding='SAME',
        dimension_numbers=('NHWC', 'HWIO', 'NHWC'))
    o = jnp.maximum(o * s2[0] + b2[0], 0.0)
    o = conv1x1(o, w3) * s3[0] + b3[0]
    o = jnp.maximum(o + x, 0.0)
    return jnp.transpose(o, (0, 3, 1, 2))


if __name__ == "__main__":
    # Small but lane-dense shapes: inplanes = planes*expansion so the identity
    # residual is valid (downsample=None in the PyTorch module).
    N, planes, H, W = 2, 32, 16, 16
    inplanes = planes * 4          # 128 channels -> lane-dense residual path

    key = jax.random.PRNGKey(0)
    kx_, kp = jax.random.split(key)
    x = jax.random.normal(kx_, (N, inplanes, H, W), jnp.float32)  # NCHW input
    params = make_params(kp, inplanes, planes)
    prepared = prepare_params(params)

    out = jax.block_until_ready(bottleneck_pallas(x, prepared))

    # bf16 operands vs f32 reference -> loosened tolerance.
    ref = bottleneck_reference(x, params)
    np.testing.assert_allclose(np.asarray(out), np.asarray(ref),
                               rtol=5e-2, atol=1e-1)
    print("KERNEL_OK")
</pallas_src>

<mosaic_0001>
module attributes {stable_mosaic.version = 11 : i64} {
  func.func @bottleneck_kernel(%arg0: i32, %arg1: memref<1x16x16x128xbf16, #tpu.memory_space<vmem>>, %arg2: memref<128x32xbf16, #tpu.memory_space<vmem>>, %arg3: memref<1x32xf32, #tpu.memory_space<vmem>>, %arg4: memref<96x96xbf16, #tpu.memory_space<vmem>>, %arg5: memref<1x32xf32, #tpu.memory_space<vmem>>, %arg6: memref<32x128xbf16, #tpu.memory_space<vmem>>, %arg7: memref<1x128xf32, #tpu.memory_space<vmem>>, %arg8: memref<1x16x16x128xf32, #tpu.memory_space<vmem>>) attributes {dimension_semantics = [#tpu.dimension_semantics<parallel>], iteration_bounds = array<i64: 2>, scalar_prefetch = 0 : i64, scratch_operands = 0 : i64, tpu.core_type = #tpu.core_type<tc>, window_params = [{transform_indices = @transform_0, window_bounds = array<i64: 1, 16, 16, 128>}, {pipeline_mode = #tpu.pipeline_mode<synchronous>, transform_indices = @transform_1, window_bounds = array<i64: 128, 32>}, {pipeline_mode = #tpu.pipeline_mode<synchronous>, transform_indices = @transform_2, window_bounds = array<i64: 1, 32>}, {pipeline_mode = #tpu.pipeline_mode<synchronous>, transform_indices = @transform_3, window_bounds = array<i64: 96, 96>}, {pipeline_mode = #tpu.pipeline_mode<synchronous>, transform_indices = @transform_4, window_bounds = array<i64: 1, 32>}, {pipeline_mode = #tpu.pipeline_mode<synchronous>, transform_indices = @transform_5, window_bounds = array<i64: 32, 128>}, {pipeline_mode = #tpu.pipeline_mode<synchronous>, transform_indices = @transform_6, window_bounds = array<i64: 1, 128>}, {transform_indices = @transform_7, window_bounds = array<i64: 1, 16, 16, 128>}]} {
    %c0 = arith.constant 0 : index
    %c0_0 = arith.constant 0 : index
    %c0_1 = arith.constant 0 : index
    %c0_2 = arith.constant 0 : index
    %0 = vector.load %arg1[%c0, %c0_0, %c0_1, %c0_2] : memref<1x16x16x128xbf16, #tpu.memory_space<vmem>>, vector<1x16x16x128xbf16>
    %1 = vector.shape_cast %0 : vector<1x16x16x128xbf16> to vector<256x128xbf16>
    %c0_3 = arith.constant 0 : index
    %c0_4 = arith.constant 0 : index
    %2 = vector.load %arg2[%c0_3, %c0_4] : memref<128x32xbf16, #tpu.memory_space<vmem>>, vector<128x32xbf16>
    %cst = arith.constant dense<0.000000e+00> : vector<256x32xf32>
    %3 = tpu.matmul %1, %2, %cst {dimension_numbers = #tpu.dot_dimension_numbers<[1], [0], [0], [1], [0, 0, 1, 1], [], []>} : vector<256x128xbf16>, vector<128x32xbf16>, vector<256x32xf32> -> vector<256x32xf32>
    %c0_5 = arith.constant 0 : index
    %c0_6 = arith.constant 0 : index
    %4 = vector.load %arg3[%c0_5, %c0_6] : memref<1x32xf32, #tpu.memory_space<vmem>>, vector<1x32xf32>
    %5 = vector.broadcast %4 : vector<1x32xf32> to vector<256x32xf32>
    %6 = arith.addf %3, %5 : vector<256x32xf32>
    %cst_7 = arith.constant 0.000000e+00 : f32
    %7 = vector.broadcast %cst_7 : f32 to vector<256x32xf32>
    %8 = arith.maximumf %6, %7 : vector<256x32xf32>
    %9 = tpu.iota {dimensions = array<i32: 0>} : vector<256x1xi32>
    %c16_i32 = arith.constant 16 : i32
    %c0_i32 = arith.constant 0 : i32
    %10 = arith.cmpi eq, %c16_i32, %c0_i32 : i32
    %c1_i32 = arith.constant 1 : i32
    %11 = arith.select %10, %c1_i32, %c16_i32 : i32
    %12 = vector.broadcast %11 : i32 to vector<256x1xi32>
    %13 = arith.remsi %9, %12 : vector<256x1xi32>
    %c0_i32_8 = arith.constant 0 : i32
    %14 = vector.broadcast %c0_i32_8 : i32 to vector<256x1xi32>
    %15 = arith.cmpi ne, %13, %14 : vector<256x1xi32>
    %c0_i32_9 = arith.constant 0 : i32
    %16 = vector.broadcast %c0_i32_9 : i32 to vector<256x1xi32>
    %17 = arith.cmpi slt, %13, %16 : vector<256x1xi32>
    %c0_i32_10 = arith.constant 0 : i32
    %18 = arith.cmpi slt, %11, %c0_i32_10 : i32
    %19 = vector.broadcast %18 : i1 to vector<256x1xi1>
    %20 = vector.broadcast %19 : vector<256x1xi1> to vector<256x1xi1>
    %21 = arith.xori %17, %20 : vector<256x1xi1>
    %22 = arith.andi %21, %15 : vector<256x1xi1>
    %23 = vector.broadcast %11 : i32 to vector<256x1xi32>
    %24 = arith.addi %13, %23 : vector<256x1xi32>
    %25 = arith.select %22, %24, %13 : vector<256x1xi1>, vector<256x1xi32>
    %c0_i32_11 = arith.constant 0 : i32
    %26 = vector.broadcast %c0_i32_11 : i32 to vector<256x1xi32>
    %27 = arith.cmpi ne, %25, %26 : vector<256x1xi32>
    %c15_i32 = arith.constant 15 : i32
    %28 = vector.broadcast %c15_i32 : i32 to vector<256x1xi32>
    %29 = arith.cmpi ne, %25, %28 : vector<256x1xi32>
    %c16_i32_12 = arith.constant 16 : i32
    %30 = vector.broadcast %c16_i32_12 : i32 to vector<256x1xi32>
    %31 = arith.cmpi sge, %9, %30 : vector<256x1xi32>
    %c240_i32 = arith.constant 240 : i32
    %32 = vector.broadcast %c240_i32 : i32 to vector<256x1xi32>
    %33 = arith.cmpi slt, %9, %32 : vector<256x1xi32>
    %c1_i32_13 = arith.constant 1 : i32
    %34 = tpu.dynamic_rotate %8 by %c1_i32_13 dim 0 : vector<256x32xf32>, i32 -> vector<256x32xf32>
    %cst_14 = arith.constant 0.000000e+00 : f32
    %35 = vector.shape_cast %27 : vector<256x1xi1> to vector<256x1xi1>
    %36 = vector.broadcast %35 : vector<256x1xi1> to vector<256x32xi1>
    %37 = vector.broadcast %cst_14 : f32 to vector<256x32xf32>
    %38 = arith.select %36, %34, %37 : vector<256x32xi1>, vector<256x32xf32>
    %c255_i32 = arith.constant 255 : i32
    %39 = tpu.dynamic_rotate %8 by %c255_i32 dim 0 : vector<256x32xf32>, i32 -> vector<256x32xf32>
    %cst_15 = arith.constant 0.000000e+00 : f32
    %40 = vector.shape_cast %29 : vector<256x1xi1> to vector<256x1xi1>
    %41 = vector.broadcast %40 : vector<256x1xi1> to vector<256x32xi1>
    %42 = vector.broadcast %cst_15 : f32 to vector<256x32xf32>
    %43 = arith.select %41, %39, %42 : vector<256x32xi1>, vector<256x32xf32>
    %44 = tpu.concatenate %38, %8, %43 in 1 : vector<256x32xf32>, vector<256x32xf32>, vector<256x32xf32> -> vector<256x96xf32>
    %45 = arith.truncf %44 : vector<256x96xf32> to vector<256x96xbf16>
    %c0_16 = arith.constant 0 : index
    %c0_17 = arith.constant 0 : index
    %46 = vector.load %arg4[%c0_16, %c0_17] : memref<96x96xbf16, #tpu.memory_space<vmem>>, vector<96x96xbf16>
    %cst_18 = arith.constant dense<0.000000e+00> : vector<256x96xf32>
    %47 = tpu.matmul %45, %46, %cst_18 {dimension_numbers = #tpu.dot_dimension_numbers<[1], [0], [0], [1], [0, 0, 1, 1], [], []>} : vector<256x96xbf16>, vector<96x96xbf16>, vector<256x96xf32> -> vector<256x96xf32>
    %48 = vector.extract_strided_slice %47 {offsets = [0, 0], sizes = [256, 32], strides = [1, 1]} : vector<256x96xf32> to vector<256x32xf32>
    %c16_i32_19 = arith.constant 16 : i32
    %49 = tpu.dynamic_rotate %48 by %c16_i32_19 dim 0 : vector<256x32xf32>, i32 -> vector<256x32xf32>
    %cst_20 = arith.constant 0.000000e+00 : f32
    %50 = vector.shape_cast %31 : vector<256x1xi1> to vector<256x1xi1>
    %51 = vector.broadcast %50 : vector<256x1xi1> to vector<256x32xi1>
    %52 = vector.broadcast %cst_20 : f32 to vector<256x32xf32>
    %53 = arith.select %51, %49, %52 : vector<256x32xi1>, vector<256x32xf32>
    %54 = vector.extract_strided_slice %47 {offsets = [0, 32], sizes = [256, 32], strides = [1, 1]} : vector<256x96xf32> to vector<256x32xf32>
    %55 = vector.extract_strided_slice %47 {offsets = [0, 64], sizes = [256, 32], strides = [1, 1]} : vector<256x96xf32> to vector<256x32xf32>
    %c240_i32_21 = arith.constant 240 : i32
    %56 = tpu.dynamic_rotate %55 by %c240_i32_21 dim 0 : vector<256x32xf32>, i32 -> vector<256x32xf32>
    %cst_22 = arith.constant 0.000000e+00 : f32
    %57 = vector.shape_cast %33 : vector<256x1xi1> to vector<256x1xi1>
    %58 = vector.broadcast %57 : vector<256x1xi1> to vector<256x32xi1>
    %59 = vector.broadcast %cst_22 : f32 to vector<256x32xf32>
    %60 = arith.select %58, %56, %59 : vector<256x32xi1>, vector<256x32xf32>
    %61 = arith.addf %53, %54 : vector<256x32xf32>
    %62 = arith.addf %61, %60 : vector<256x32xf32>
    %c0_23 = arith.constant 0 : index
    %c0_24 = arith.constant 0 : index
    %63 = vector.load %arg5[%c0_23, %c0_24] : memref<1x32xf32, #tpu.memory_space<vmem>>, vector<1x32xf32>
    %64 = vector.broadcast %63 : vector<1x32xf32> to vector<256x32xf32>
    %65 = arith.addf %62, %64 : vector<256x32xf32>
    %cst_25 = arith.constant 0.000000e+00 : f32
    %66 = vector.broadcast %cst_25 : f32 to vector<256x32xf32>
    %67 = arith.maximumf %65, %66 : vector<256x32xf32>
    %68 = arith.truncf %67 : vector<256x32xf32> to vector<256x32xbf16>
    %c0_26 = arith.constant 0 : index
    %c0_27 = arith.constant 0 : index
    %69 = vector.load %arg6[%c0_26, %c0_27] : memref<32x128xbf16, #tpu.memory_space<vmem>>, vector<32x128xbf16>
    %cst_28 = arith.constant dense<0.000000e+00> : vector<256x128xf32>
    %70 = tpu.matmul %68, %69, %cst_28 {dimension_numbers = #tpu.dot_dimension_numbers<[1], [0], [0], [1], [0, 0, 1, 1], [], []>} : vector<256x32xbf16>, vector<32x128xbf16>, vector<256x128xf32> -> vector<256x128xf32>
    %c0_29 = arith.constant 0 : index
    %c0_30 = arith.constant 0 : index
    %71 = vector.load %arg7[%c0_29, %c0_30] : memref<1x128xf32, #tpu.memory_space<vmem>>, vector<1x128xf32>
    %72 = vector.broadcast %71 : vector<1x128xf32> to vector<256x128xf32>
    %73 = arith.addf %70, %72 : vector<256x128xf32>
    %74 = arith.extf %1 : vector<256x128xbf16> to vector<256x128xf32>
    %75 = arith.addf %73, %74 : vector<256x128xf32>
    %cst_31 = arith.constant 0.000000e+00 : f32
    %76 = vector.broadcast %cst_31 : f32 to vector<256x128xf32>
    %77 = arith.maximumf %75, %76 : vector<256x128xf32>
    %78 = vector.shape_cast %77 : vector<256x128xf32> to vector<1x16x16x128xf32>
    %c0_32 = arith.constant 0 : index
    %c0_33 = arith.constant 0 : index
    %c0_34 = arith.constant 0 : index
    %c0_35 = arith.constant 0 : index
    %79 = vector.load %arg8[%c0_32, %c0_33, %c0_34, %c0_35] : memref<1x16x16x128xf32, #tpu.memory_space<vmem>>, vector<1x16x16x128xf32>
    tpu.vector_store %arg8[%c0_32, %c0_33, %c0_34, %c0_35], %78 {strides = array<i32>} : memref<1x16x16x128xf32, #tpu.memory_space<vmem>>, vector<1x16x16x128xf32>,
    return
  }
  func.func @transform_0(%arg0: i32) -> (i32, i32, i32, i32) {
    %c0_i32 = arith.constant 0 : i32
    %c0_i32_0 = arith.constant 0 : i32
    %c0_i32_1 = arith.constant 0 : i32
    %c0_i32_2 = arith.constant 0 : i32
    return %arg0, %c0_i32, %c0_i32_0, %c0_i32_1 : i32, i32, i32, i32
  }
  func.func @transform_1(%arg0: i32) -> (i32, i32) {
    %c0_i32 = arith.constant 0 : i32
    %c0_i32_0 = arith.constant 0 : i32
    %c0_i32_1 = arith.constant 0 : i32
    return %c0_i32, %c0_i32_0 : i32, i32
  }
  func.func @transform_2(%arg0: i32) -> (i32, i32) {
    %c0_i32 = arith.constant 0 : i32
    %c0_i32_0 = arith.constant 0 : i32
    %c0_i32_1 = arith.constant 0 : i32
    return %c0_i32, %c0_i32_0 : i32, i32
  }
  func.func @transform_3(%arg0: i32) -> (i32, i32) {
    %c0_i32 = arith.constant 0 : i32
    %c0_i32_0 = arith.constant 0 : i32
    %c0_i32_1 = arith.constant 0 : i32
    return %c0_i32, %c0_i32_0 : i32, i32
  }
  func.func @transform_4(%arg0: i32) -> (i32, i32) {
    %c0_i32 = arith.constant 0 : i32
    %c0_i32_0 = arith.constant 0 : i32
    %c0_i32_1 = arith.constant 0 : i32
    return %c0_i32, %c0_i32_0 : i32, i32
  }
  func.func @transform_5(%arg0: i32) -> (i32, i32) {
    %c0_i32 = arith.constant 0 : i32
    %c0_i32_0 = arith.constant 0 : i32
    %c0_i32_1 = arith.constant 0 : i32
    return %c0_i32, %c0_i32_0 : i32, i32
  }
  func.func @transform_6(%arg0: i32) -> (i32, i32) {
    %c0_i32 = arith.constant 0 : i32
    %c0_i32_0 = arith.constant 0 : i32
    %c0_i32_1 = arith.constant 0 : i32
    return %c0_i32, %c0_i32_0 : i32, i32
  }
  func.func @transform_7(%arg0: i32) -> (i32, i32, i32, i32) {
    %c0_i32 = arith.constant 0 : i32
    %c0_i32_0 = arith.constant 0 : i32
    %c0_i32_1 = arith.constant 0 : i32
    %c0_i32_2 = arith.constant 0 : i32
    return %arg0, %c0_i32, %c0_i32_0, %c0_i32_1 : i32, i32, i32, i32
  }
}

</mosaic_0001>

<llo_original>
// kernel: bottleneck_pallas.1
$region0: #{bottleneck_pallas.1}
  #allocation0 [shape = 'u32[]', space=smem, size = 0x4, offset = 0x4, fixed_abs, tag = 'smem constant byte address 0x4 - core index']
  #allocation1 [shape = 'u32[72,128]{1,0:T(1,128)}', space=vmem, size = 0x9000, scoped, tag = 'internal scratch']
  %s0 = inlined_call_operand.vmem [shape: bf16[2,16,16,128], index: 0, kind: input, shape index: {}]
  %s1 = inlined_call_operand.vmem [shape: bf16[128,32], index: 1, kind: input, shape index: {}]
  %s2 = inlined_call_operand.vmem [shape: f32[1,32], index: 2, kind: input, shape index: {}]
  %s3 = inlined_call_operand.vmem [shape: bf16[96,96], index: 3, kind: input, shape index: {}]
  %s4 = inlined_call_operand.vmem [shape: f32[1,32], index: 4, kind: input, shape index: {}]
  %s5 = inlined_call_operand.vmem [shape: bf16[32,128], index: 5, kind: input, shape index: {}]
  %s6 = inlined_call_operand.vmem [shape: f32[1,128], index: 6, kind: input, shape index: {}]
  %s7 = inlined_call_operand.hbm [shape: f32[2,16,16,128], index: 7, kind: output, shape index: {}]
  %s8 = sld [smem:[#allocation0]]
  $region61: #{bottleneck_pallas.1} parent=0
    _
  %s10 = ssub.s32 1, %s8
  %s11 = scalar_select 0, %s10, %s8
  $region1: #{bottleneck_pallas.1} parent=0
    #allocation2 [shape = 'u8[262144]{0}', space=vmem, size = 0x40000, scoped, tag = 'output window, operand 0']
    #allocation3 [shape = 's32[2]{0}', space=sflag, size = 0x8, scoped, tag = 'scoped memory for bottleneck_pallas.1']
    %12 = vsyncpa [#allocation3], 0
    %s13 = scalar_lea.sflag [#allocation3], 1
    %14 = vsyncpa %s13, 0
    loop: start=0, step=1, limit=4
    $region2: #{bottleneck_pallas.1} parent=1 // loop_pre_header
      _
    $region3: #{bottleneck_pallas.1} parent=1 // loop_header
      %s16 = sphi 0, %s20
      %p17 = scmp.ge.s32.totalorder %s16, 4
      %s26 = sphi 0, %s28
      %s29 = sphi 0, %s26
      %s30 = sphi 0, %s29
      %s46 = sphi 0, %s30
      %s50 = sphi 0, %s50
      %s52 = sphi 0, %s50
      %s53 = sphi 0, %s52
      %s67 = sphi 0, %s53
      %s71 = sphi 0, %s71
      %s73 = sphi 0, %s71
      %s74 = sphi 0, %s73
      %s88 = sphi 0, %s74
      %s92 = sphi 0, %s92
      %s94 = sphi 0, %s92
      %s95 = sphi 0, %s94
      %s109 = sphi 0, %s95
      %s113 = sphi 0, %s113
      %s115 = sphi 0, %s113
      %s116 = sphi 0, %s115
      %s130 = sphi 0, %s116
      %s134 = sphi 0, %s134
      %s136 = sphi 0, %s134
      %s137 = sphi 0, %s136
      %s151 = sphi 0, %s137
      %s155 = sphi 0, %s155
      %s157 = sphi 0, %s155
      %s158 = sphi 0, %s157
      %s172 = sphi 0, %s158
      %s178 = sphi 0, %s180
      %s181 = sphi 0, %s178
      %s182 = sphi 0, %s181
      %s198 = sphi 0, %s182
    $region4: #{bottleneck_pallas.1} parent=1 // loop_header_branch
      %19 = sbr.rel (%p17) target = $region8
    $region5: #{bottleneck_pallas.1} parent=1 // loop_body
      %s21 = ssub.s32 %s16, 1
      %s22 = ssub.s32 %s16, 2
      %s23 = sadd.s32 %s16, 1
      %s24 = ssub.s32 %s16, %s23
      %p25 = scmp.eq.s32.totalorder %s24, 0
      %s27 = sadd.s32 %s26, 1
      %s28 = scalar_select %p25, %s26, %s27
      %p31 = pneg %p25
      %p32 = scmp.eq.s32.totalorder %s16, 1
      %p33 = por %p31, %p32
      %p34 = scmp.ne.s32.totalorder %s26, %s29
      %p35 = scmp.eq.s32.totalorder %s16, 0
      %p36 = por %p34, %p35
      %p37 = scmp.ne.s32.totalorder %s26, %s29
      %p38 = scmp.eq.s32.totalorder %s21, 1
      %p39 = por %p37, %p38
      %p40 = scmp.ne.s32.totalorder %s29, %s30
      %p41 = scmp.eq.s32.totalorder %s21, 0
      %p42 = por %p40, %p41
      %p43 = scmp.ne.s32.totalorder %s29, %s30
      %p44 = scmp.eq.s32.totalorder %s22, 1
      %p45 = por %p43, %p44
      %p47 = scmp.ne.s32.totalorder %s30, %s46
      %p48 = scmp.eq.s32.totalorder %s22, 0
      %p49 = por %p47, %p48
      %s51 = sadd.s32 %s50, 1
      %p54 = scmp.eq.s32.totalorder %s16, 1
      %p55 = scmp.ne.s32.totalorder %s50, %s52
      %p56 = scmp.eq.s32.totalorder %s16, 0
      %p57 = por %p55, %p56
      %p58 = scmp.ne.s32.totalorder %s50, %s52
      %p59 = scmp.eq.s32.totalorder %s21, 1
      %p60 = por %p58, %p59
      %p61 = scmp.ne.s32.totalorder %s52, %s53
      %p62 = scmp.eq.s32.totalorder %s21, 0
      %p63 = por %p61, %p62
      %p64 = scmp.ne.s32.totalorder %s52, %s53
      %p65 = scmp.eq.s32.totalorder %s22, 1
      %p66 = por %p64, %p65
      %p68 = scmp.ne.s32.totalorder %s53, %s67
      %p69 = scmp.eq.s32.totalorder %s22, 0
      %p70 = por %p68, %p69
      %s72 = sadd.s32 %s71, 1
      %p75 = scmp.eq.s32.totalorder %s16, 1
      %p76 = scmp.ne.s32.totalorder %s71, %s73
      %p77 = scmp.eq.s32.totalorder %s16, 0
      %p78 = por %p76, %p77
      %p79 = scmp.ne.s32.totalorder %s71, %s73
      %p80 = scmp.eq.s32.totalorder %s21, 1
      %p81 = por %p79, %p80
      %p82 = scmp.ne.s32.totalorder %s73, %s74
      %p83 = scmp.eq.s32.totalorder %s21, 0
      %p84 = por %p82, %p83
      %p85 = scmp.ne.s32.totalorder %s73, %s74
      %p86 = scmp.eq.s32.totalorder %s22, 1
      %p87 = por %p85, %p86
      %p89 = scmp.ne.s32.totalorder %s74, %s88
      %p90 = scmp.eq.s32.totalorder %s22, 0
      %p91 = por %p89, %p90
      %s93 = sadd.s32 %s92, 1
      %p96 = scmp.eq.s32.totalorder %s16, 1
      %p97 = scmp.ne.s32.totalorder %s92, %s94
      %p98 = scmp.eq.s32.totalorder %s16, 0
      %p99 = por %p97, %p98
      %p100 = scmp.ne.s32.totalorder %s92, %s94
      %p101 = scmp.eq.s32.totalorder %s21, 1
      %p102 = por %p100, %p101
      %p103 = scmp.ne.s32.totalorder %s94, %s95
      %p104 = scmp.eq.s32.totalorder %s21, 0
      %p105 = por %p103, %p104
      %p106 = scmp.ne.s32.totalorder %s94, %s95
      %p107 = scmp.eq.s32.totalorder %s22, 1
      %p108 = por %p106, %p107
      %p110 = scmp.ne.s32.totalorder %s95, %s109
      %p111 = scmp.eq.s32.totalorder %s22, 0
      %p112 = por %p110, %p111
      %s114 = sadd.s32 %s113, 1
      %p117 = scmp.eq.s32.totalorder %s16, 1
      %p118 = scmp.ne.s32.totalorder %s113, %s115
      %p119 = scmp.eq.s32.totalorder %s16, 0
      %p120 = por %p118, %p119
      %p121 = scmp.ne.s32.totalorder %s113, %s115
      %p122 = scmp.eq.s32.totalorder %s21, 1
      %p123 = por %p121, %p122
      %p124 = scmp.ne.s32.totalorder %s115, %s116
      %p125 = scmp.eq.s32.totalorder %s21, 0
      %p126 = por %p124, %p125
      %p127 = scmp.ne.s32.totalorder %s115, %s116
      %p128 = scmp.eq.s32.totalorder %s22, 1
      %p129 = por %p127, %p128
      %p131 = scmp.ne.s32.totalorder %s116, %s130
      %p132 = scmp.eq.s32.totalorder %s22, 0
      %p133 = por %p131, %p132
      %s135 = sadd.s32 %s134, 1
      %p138 = scmp.eq.s32.totalorder %s16, 1
      %p139 = scmp.ne.s32.totalorder %s134, %s136
      %p140 = scmp.eq.s32.totalorder %s16, 0
      %p141 = por %p139, %p140
      %p142 = scmp.ne.s32.totalorder %s134, %s136
      %p143 = scmp.eq.s32.totalorder %s21, 1
      %p144 = por %p142, %p143
      %p145 = scmp.ne.s32.totalorder %s136, %s137
      %p146 = scmp.eq.s32.totalorder %s21, 0
      %p147 = por %p145, %p146
      %p148 = scmp.ne.s32.totalorder %s136, %s137
      %p149 = scmp.eq.s32.totalorder %s22, 1
      %p150 = por %p148, %p149
      %p152 = scmp.ne.s32.totalorder %s137, %s151
      %p153 = scmp.eq.s32.totalorder %s22, 0
      %p154 = por %p152, %p153
      %s156 = sadd.s32 %s155, 1
      %p159 = scmp.eq.s32.totalorder %s16, 1
      %p160 = scmp.ne.s32.totalorder %s155, %s157
      %p161 = scmp.eq.s32.totalorder %s16, 0
      %p162 = por %p160, %p161
      %p163 = scmp.ne.s32.totalorder %s155, %s157
      %p164 = scmp.eq.s32.totalorder %s21, 1
      %p165 = por %p163, %p164
      %p166 = scmp.ne.s32.totalorder %s157, %s158
      %p167 = scmp.eq.s32.totalorder %s21, 0
      %p168 = por %p166, %p167
      %p169 = scmp.ne.s32.totalorder %s157, %s158
      %p170 = scmp.eq.s32.totalorder %s22, 1
      %p171 = por %p169, %p170
      %p173 = scmp.ne.s32.totalorder %s158, %s172
      %p174 = scmp.eq.s32.totalorder %s22, 0
      %p175 = por %p173, %p174
      %s176 = ssub.s32 %s16, %s23
      %p177 = scmp.eq.s32.totalorder %s176, 0
      %s179 = sadd.s32 %s178, 1
      %s180 = scalar_select %p177, %s178, %s179
      %p183 = pneg %p177
      %p184 = scmp.eq.s32.totalorder %s16, 1
      %p185 = por %p183, %p184
      %p186 = scmp.ne.s32.totalorder %s178, %s181
      %p187 = scmp.eq.s32.totalorder %s16, 0
      %p188 = por %p186, %p187
      %p189 = scmp.ne.s32.totalorder %s178, %s181
      %p190 = scmp.eq.s32.totalorder %s21, 1
      %p191 = por %p189, %p190
      %p192 = scmp.ne.s32.totalorder %s181, %s182
      %p193 = scmp.eq.s32.totalorder %s21, 0
      %p194 = por %p192, %p193
      %p195 = scmp.ne.s32.totalorder %s181, %s182
      %p196 = scmp.eq.s32.totalorder %s22, 1
      %p197 = por %p195, %p196
      %p199 = scmp.ne.s32.totalorder %s182, %s198
      %p200 = scmp.eq.s32.totalorder %s22, 0
      %p201 = por %p199, %p200
      %p202 = scmp.le.s32.totalorder 1, %s16
      %p203 = scmp.lt.s32.totalorder %s16, 3
      %p204 = pnand %p202, %p203
      %p205 = pneg %p204
      // Predicated region
      $region9: #{bottleneck_pallas.1} parent=5 // pred_check
        _
      $region10: #{bottleneck_pallas.1} parent=5 // pred_check_branch
        %207 = sbr.rel (%p204) target = $region12
      $region11: #{bottleneck_pallas.1} parent=5 // pred_region
        %s208 = ssub.s32 %s16, 1
        // Predicated region
        $region13: #{bottleneck_pallas.1} parent=11 // pred_check
          %p209 = pneg %p63
        $region14: #{bottleneck_pallas.1} parent=11 // pred_check_branch
          %211 = sbr.rel (%p209) target = $region16
        $region15: #{bottleneck_pallas.1} parent=11 // pred_region
          _
        $region16: #{bottleneck_pallas.1} parent=11 // pred_fallthru
          _
        // Predicated region
        $region17: #{bottleneck_pallas.1} parent=11 // pred_check
          %p212 = pneg %p84
        $region18: #{bottleneck_pallas.1} parent=11 // pred_check_branch
          %214 = sbr.rel (%p212) target = $region20
        $region19: #{bottleneck_pallas.1} parent=11 // pred_region
          _
        $region20: #{bottleneck_pallas.1} parent=11 // pred_fallthru
          _
        // Predicated region
        $region21: #{bottleneck_pallas.1} parent=11 // pred_check
          %p215 = pneg %p105
        $region22: #{bottleneck_pallas.1} parent=11 // pred_check_branch
          %217 = sbr.rel (%p215) target = $region24
        $region23: #{bottleneck_pallas.1} parent=11 // pred_region
          _
        $region24: #{bottleneck_pallas.1} parent=11 // pred_fallthru
          _
        // Predicated region
        $region25: #{bottleneck_pallas.1} parent=11 // pred_check
          %p218 = pneg %p126
        $region26: #{bottleneck_pallas.1} parent=11 // pred_check_branch
          %220 = sbr.rel (%p218) target = $region28
        $region27: #{bottleneck_pallas.1} parent=11 // pred_region
          _
        $region28: #{bottleneck_pallas.1} parent=11 // pred_fallthru
          _
        // Predicated region
        $region29: #{bottleneck_pallas.1} parent=11 // pred_check
          %p221 = pneg %p147
        $region30: #{bottleneck_pallas.1} parent=11 // pred_check_branch
          %223 = sbr.rel (%p221) target = $region32
        $region31: #{bottleneck_pallas.1} parent=11 // pred_region
          _
        $region32: #{bottleneck_pallas.1} parent=11 // pred_fallthru
          _
        // Predicated region
        $region33: #{bottleneck_pallas.1} parent=11 // pred_check
          %p224 = pneg %p168
        $region34: #{bottleneck_pallas.1} parent=11 // pred_check_branch
          %226 = sbr.rel (%p224) target = $region36
        $region35: #{bottleneck_pallas.1} parent=11 // pred_region
          _
        $region36: #{bottleneck_pallas.1} parent=11 // pred_fallthru
          _
      $region12: #{bottleneck_pallas.1} parent=5 // pred_fallthru
        _
      %p227 = scmp.lt.s32.totalorder %s16, 2
      // Predicated region
      $region37: #{bottleneck_pallas.1} parent=5 // pred_check
        %p228 = pneg %p227
      $region38: #{bottleneck_pallas.1} parent=5 // pred_check_branch
        %230 = sbr.rel (%p228) target = $region40
      $region39: #{bottleneck_pallas.1} parent=5 // pred_region
        // Predicated region
        $region41: #{bottleneck_pallas.1} parent=39 // pred_check
          %p231 = pneg %p36
        $region42: #{bottleneck_pallas.1} parent=39 // pred_check_branch
          %233 = sbr.rel (%p231) target = $region44
        $region43: #{bottleneck_pallas.1} parent=39 // pred_region
          %p234 = scmp.lt.s32.totalorder %s16, 1
          %s235 = scalar_select %p234, %s16, 1
          %s236 = smul.addr %s235, 32
          %s237 = smul.addr %s236, 4
          %s238 = scalar_lea.vmem %s0, %s237
        $region44: #{bottleneck_pallas.1} parent=39 // pred_fallthru
          _
      $region40: #{bottleneck_pallas.1} parent=5 // pred_fallthru
        _
      %p239 = scmp.le.s32.totalorder 1, %s16
      %p240 = scmp.lt.s32.totalorder %s16, 3
      %p241 = pnand %p239, %p240
      %p242 = pneg %p241
      // Predicated region
      $region45: #{bottleneck_pallas.1} parent=5 // pred_check
        _
      $region46: #{bottleneck_pallas.1} parent=5 // pred_check_branch
        %244 = sbr.rel (%p241) target = $region48
      $region47: #{bottleneck_pallas.1} parent=5 // pred_region
        %s245 = ssub.s32 %s16, 1
        %p246 = scmp.lt.s32.totalorder %s21, 1
        %s247 = scalar_select %p246, %s21, 1
        %s248 = smul.addr %s247, 32
        %s249 = smul.addr %s248, 4
        %s250 = scalar_lea.vmem %s0, %s249
        %p251 = pneg %p42
        %p252 = pneg %p39
        %p253 = pneg %p63
        %p254 = pneg %p60
        %p255 = pneg %p84
        %p256 = pneg %p81
        %p257 = pneg %p105
        %p258 = pneg %p102
        %p259 = pneg %p126
        %p260 = pneg %p123
        %p261 = pneg %p147
        %p262 = pneg %p144
        %p263 = pneg %p168
        %p264 = pneg %p165
        %p265 = pneg %p194
        %p266 = pneg %p191
        %s267 = sand.u32 %s181, 1
        %s268 = scalar_lea.sflag [#allocation3], %s267
        %s269 = sand.u32 %s181, 1
        %s270 = smul.addr %s269, 256
        %s271 = scalar_lea.vmem [#allocation2], %s270
        %p272 = scmp.lt.s32.totalorder %s21, 1
        %s273 = scalar_select %p272, %s21, 1
        %s274 = smul.addr %s273, 32
        %s275 = smul.addr %s274, 4
        %s276 = scalar_lea.vmem %s0, %s275
        %v278 = vld [vmem:[%s276] sm:$0xf]
        %v279 = vld [vmem:[%s276 + $0x4] sm:$0xf]
        %v280 = vld [vmem:[%s276 + $0x8] sm:$0xf]
        %v281 = vld [vmem:[%s276 + $0xc] sm:$0xf]
        %v282 = vld [vmem:[%s276 + $0x10] sm:$0xf]
        %v283 = vld [vmem:[%s276 + $0x14] sm:$0xf]
        %v284 = vld [vmem:[%s276 + $0x18] sm:$0xf]
        %v285 = vld [vmem:[%s276 + $0x1c] sm:$0xf]
        %v286 = vld [vmem:[%s276 + $0x20] sm:$0xf]
        %v287 = vld [vmem:[%s276 + $0x24] sm:$0xf]
        %v288 = vld [vmem:[%s276 + $0x28] sm:$0xf]
        %v289 = vld [vmem:[%s276 + $0x2c] sm:$0xf]
        %v290 = vld [vmem:[%s276 + $0x30] sm:$0xf]
        %v291 = vld [vmem:[%s276 + $0x34] sm:$0xf]
        %v292 = vld [vmem:[%s276 + $0x38] sm:$0xf]
        %v293 = vld [vmem:[%s276 + $0x3c] sm:$0xf]
        %v294 = vld [vmem:[%s276 + $0x40] sm:$0xf]
        %v295 = vld [vmem:[%s276 + $0x44] sm:$0xf]
        %v296 = vld [vmem:[%s276 + $0x48] sm:$0xf]
        %v297 = vld [vmem:[%s276 + $0x4c] sm:$0xf]
        %v298 = vld [vmem:[%s276 + $0x50] sm:$0xf]
        %v299 = vld [vmem:[%s276 + $0x54] sm:$0xf]
        %v300 = vld [vmem:[%s276 + $0x58] sm:$0xf]
        %v301 = vld [vmem:[%s276 + $0x5c] sm:$0xf]
        %v302 = vld [vmem:[%s276 + $0x60] sm:$0xf]
        %v303 = vld [vmem:[%s276 + $0x64] sm:$0xf]
        %v304 = vld [vmem:[%s276 + $0x68] sm:$0xf]
        %v305 = vld [vmem:[%s276 + $0x6c] sm:$0xf]
        %v306 = vld [vmem:[%s276 + $0x70] sm:$0xf]
        %v307 = vld [vmem:[%s276 + $0x74] sm:$0xf]
        %v308 = vld [vmem:[%s276 + $0x78] sm:$0xf]
        %v309 = vld [vmem:[%s276 + $0x7c] sm:$0xf]
        %v310 = vld [vmem:[%s1] sm:$0xf]
        %v311 = vld [vmem:[%s1 + $0x4] sm:$0xf]
        %v312 = vld [vmem:[%s1 + $0x8] sm:$0xf]
        %v313 = vld [vmem:[%s1 + $0xc] sm:$0xf]
        %v314 = vld [vmem:[%s1 + $0x10] sm:$0xf]
        %v315 = vld [vmem:[%s1 + $0x14] sm:$0xf]
        %v316 = vld [vmem:[%s1 + $0x18] sm:$0xf]
        %v317 = vld [vmem:[%s1 + $0x1c] sm:$0xf]
        %v318 = vld [vmem:[%s1 + $0x20] sm:$0xf]
        %v319 = vld [vmem:[%s1 + $0x24] sm:$0xf]
        %v320 = vld [vmem:[%s1 + $0x28] sm:$0xf]
        %v321 = vld [vmem:[%s1 + $0x2c] sm:$0xf]
        %v322 = vld [vmem:[%s1 + $0x30] sm:$0xf]
        %v323 = vld [vmem:[%s1 + $0x34] sm:$0xf]
        %v324 = vld [vmem:[%s1 + $0x38] sm:$0xf]
        %v325 = vld [vmem:[%s1 + $0x3c] sm:$0xf]
        %v326 = vld [vmem:[%s2] sm:$0x1]
        %v328 = vperm.slane %v326, 0
        %v362 = vunpack.c.l.b16 %v278
        %v363 = vunpack.c.l.b16 %v279
        %v364 = vunpack.c.l.b16 %v280
        %v365 = vunpack.c.l.b16 %v281
        %v366 = vunpack.c.l.b16 %v282
        %v367 = vunpack.c.l.b16 %v283
        %v368 = vunpack.c.l.b16 %v284
        %v369 = vunpack.c.l.b16 %v285
        %v370 = vunpack.c.l.b16 %v286
        %v371 = vunpack.c.l.b16 %v287
        %v372 = vunpack.c.l.b16 %v288
        %v373 = vunpack.c.l.b16 %v289
        %v374 = vunpack.c.l.b16 %v290
        %v375 = vunpack.c.l.b16 %v291
        %v376 = vunpack.c.l.b16 %v292
        %v377 = vunpack.c.l.b16 %v293
        %v378 = vunpack.c.l.b16 %v294
        %v379 = vunpack.c.l.b16 %v295
        %v380 = vunpack.c.l.b16 %v296
        %v381 = vunpack.c.l.b16 %v297
        %v382 = vunpack.c.l.b16 %v298
        %v383 = vunpack.c.l.b16 %v299
        %v384 = vunpack.c.l.b16 %v300
        %v385 = vunpack.c.l.b16 %v301
        %v386 = vunpack.c.l.b16 %v302
        %v387 = vunpack.c.l.b16 %v303
        %v388 = vunpack.c.l.b16 %v304
        %v389 = vunpack.c.l.b16 %v305
        %v390 = vunpack.c.l.b16 %v306
        %v391 = vunpack.c.l.b16 %v307
        %v392 = vunpack.c.l.b16 %v308
        %v393 = vunpack.c.l.b16 %v309
        %v394 = vpack.c.b16 %v363, %v362
        %v395 = vpack.c.b16 %v365, %v364
        %v396 = vpack.c.b16 %v367, %v366
        %v397 = vpack.c.b16 %v369, %v368
        %v398 = vpack.c.b16 %v371, %v370
        %v399 = vpack.c.b16 %v373, %v372
        %v400 = vpack.c.b16 %v375, %v374
        %v401 = vpack.c.b16 %v377, %v376
        %v402 = vpack.c.b16 %v379, %v378
        %v403 = vpack.c.b16 %v381, %v380
        %v404 = vpack.c.b16 %v383, %v382
        %v405 = vpack.c.b16 %v385, %v384
        %v406 = vpack.c.b16 %v387, %v386
        %v407 = vpack.c.b16 %v389, %v388
        %v408 = vpack.c.b16 %v391, %v390
        %v409 = vpack.c.b16 %v393, %v392
        %v442 = vunpack.c.l.b16 %v310
        %v443 = vunpack.c.l.b16 %v311
        %v444 = vunpack.c.l.b16 %v312
        %v445 = vunpack.c.l.b16 %v313
        %v446 = vunpack.c.l.b16 %v314
        %v447 = vunpack.c.l.b16 %v315
        %v448 = vunpack.c.l.b16 %v316
        %v449 = vunpack.c.l.b16 %v317
        %v450 = vunpack.c.l.b16 %v318
        %v451 = vunpack.c.l.b16 %v319
        %v452 = vunpack.c.l.b16 %v320
        %v453 = vunpack.c.l.b16 %v321
        %v454 = vunpack.c.l.b16 %v322
        %v455 = vunpack.c.l.b16 %v323
        %v456 = vunpack.c.l.b16 %v324
        %v457 = vunpack.c.l.b16 %v325
        %v458 = vpack.c.b16 %v443, %v442
        %v459 = vpack.c.b16 %v445, %v444
        %v460 = vpack.c.b16 %v447, %v446
        %v461 = vpack.c.b16 %v449, %v448
        %v462 = vpack.c.b16 %v451, %v450
        %v463 = vpack.c.b16 %v453, %v452
        %v464 = vpack.c.b16 %v455, %v454
        %v465 = vpack.c.b16 %v457, %v456
        %474 = vmatpush.bf16.msra.mxu0 %v465
        %475 = vmatpush.bf16.msra.mxu0 %v464
        %476 = vmatpush.bf16.msra.mxu0 %v463
        %477 = vmatpush.bf16.msra.mxu0 %v462
        %478 = vmatpush.bf16.msra.mxu0 %v461
        %479 = vmatpush.bf16.msra.mxu0 %v460
        %480 = vmatpush.bf16.msra.mxu0 %v459
        %481 = vmatpush.bf16.msra.mxu0 %v458
        %482 = vmatmul.bf16.gmra.mxu0 %v394
        %v483 = vpop.f32.mrf.mxu0
        %v484 = vadd.f32 %v328, %v483
        %v485 = vpop.f32.mrf.mxu0
        %v486 = vadd.f32 %v328, %v485
        %487 = vmatmul.bf16.gmra.mxu0 %v395
        %v488 = vpop.f32.mrf.mxu0
        %v489 = vadd.f32 %v328, %v488
        %v490 = vpop.f32.mrf.mxu0
        %v491 = vadd.f32 %v328, %v490
        %492 = vmatmul.bf16.gmra.mxu0 %v396
        %v493 = vpop.f32.mrf.mxu0
        %v494 = vadd.f32 %v328, %v493
        %v495 = vpop.f32.mrf.mxu0
        %v496 = vadd.f32 %v328, %v495
        %497 = vmatmul.bf16.gmra.mxu0 %v397
        %v498 = vpop.f32.mrf.mxu0
        %v499 = vadd.f32 %v328, %v498
        %v500 = vpop.f32.mrf.mxu0
        %v501 = vadd.f32 %v328, %v500
        %502 = vmatmul.bf16.gmra.mxu0 %v398
        %v503 = vpop.f32.mrf.mxu0
        %v504 = vadd.f32 %v328, %v503
        %v505 = vpop.f32.mrf.mxu0
        %v506 = vadd.f32 %v328, %v505
        %507 = vmatmul.bf16.gmra.mxu0 %v399
        %v508 = vpop.f32.mrf.mxu0
        %v509 = vadd.f32 %v328, %v508
        %v510 = vpop.f32.mrf.mxu0
        %v511 = vadd.f32 %v328, %v510
        %512 = vmatmul.bf16.gmra.mxu0 %v400
        %v513 = vpop.f32.mrf.mxu0
        %v514 = vadd.f32 %v328, %v513
        %v515 = vpop.f32.mrf.mxu0
        %v516 = vadd.f32 %v328, %v515
        %517 = vmatmul.bf16.gmra.mxu0 %v401
        %v518 = vpop.f32.mrf.mxu0
        %v519 = vadd.f32 %v328, %v518
        %v520 = vpop.f32.mrf.mxu0
        %v521 = vadd.f32 %v328, %v520
        %522 = vmatmul.bf16.gmra.mxu0 %v402
        %v523 = vpop.f32.mrf.mxu0
        %v524 = vadd.f32 %v328, %v523
        %v525 = vpop.f32.mrf.mxu0
        %v526 = vadd.f32 %v328, %v525
        %527 = vmatmul.bf16.gmra.mxu0 %v403
        %v528 = vpop.f32.mrf.mxu0
        %v529 = vadd.f32 %v328, %v528
        %v530 = vpop.f32.mrf.mxu0
        %v531 = vadd.f32 %v328, %v530
        %532 = vmatmul.bf16.gmra.mxu0 %v404
        %v533 = vpop.f32.mrf.mxu0
        %v534 = vadd.f32 %v328, %v533
        %v535 = vpop.f32.mrf.mxu0
        %v536 = vadd.f32 %v328, %v535
        %537 = vmatmul.bf16.gmra.mxu0 %v405
        %v538 = vpop.f32.mrf.mxu0
        %v539 = vadd.f32 %v328, %v538
        %v540 = vpop.f32.mrf.mxu0
        %v541 = vadd.f32 %v328, %v540
        %542 = vmatmul.bf16.gmra.mxu0 %v406
        %v543 = vpop.f32.mrf.mxu0
        %v544 = vadd.f32 %v328, %v543
        %v545 = vpop.f32.mrf.mxu0
        %v546 = vadd.f32 %v328, %v545
        %547 = vmatmul.bf16.gmra.mxu0 %v407
        %v548 = vpop.f32.mrf.mxu0
        %v549 = vadd.f32 %v328, %v548
        %v550 = vpop.f32.mrf.mxu0
        %v551 = vadd.f32 %v328, %v550
        %552 = vmatmul.bf16.gmra.mxu0 %v408
        %v553 = vpop.f32.mrf.mxu0
        %v554 = vadd.f32 %v328, %v553
        %v555 = vpop.f32.mrf.mxu0
        %v556 = vadd.f32 %v328, %v555
        %557 = vmatmul.bf16.gmra.mxu0 %v409
        %v558 = vpop.f32.mrf.mxu0
        %v559 = vadd.f32 %v328, %v558
        %v560 = vpop.f32.mrf.mxu0
        %v561 = vadd.f32 %v328, %v560
        %562 = vdwg.mxu0
        %v563 = vmax.f32 %v484, 0.0
        %v564 = vmax.f32 %v486, 0.0
        %v565 = vmax.f32 %v489, 0.0
        %v566 = vmax.f32 %v491, 0.0
        %v567 = vmax.f32 %v494, 0.0
        %v568 = vmax.f32 %v496, 0.0
        %v569 = vmax.f32 %v499, 0.0
        %v570 = vmax.f32 %v501, 0.0
        %v571 = vmax.f32 %v504, 0.0
        %v572 = vmax.f32 %v506, 0.0
        %v573 = vmax.f32 %v509, 0.0
        %v574 = vmax.f32 %v511, 0.0
        %v575 = vmax.f32 %v514, 0.0
        %v576 = vmax.f32 %v516, 0.0
        %v577 = vmax.f32 %v519, 0.0
        %v578 = vmax.f32 %v521, 0.0
        %v579 = vmax.f32 %v524, 0.0
        %v580 = vmax.f32 %v526, 0.0
        %v581 = vmax.f32 %v529, 0.0
        %v582 = vmax.f32 %v531, 0.0
        %v583 = vmax.f32 %v534, 0.0
        %v584 = vmax.f32 %v536, 0.0
        %v585 = vmax.f32 %v539, 0.0
        %v586 = vmax.f32 %v541, 0.0
        %v587 = vmax.f32 %v544, 0.0
        %v588 = vmax.f32 %v546, 0.0
        %v589 = vmax.f32 %v549, 0.0
        %v590 = vmax.f32 %v551, 0.0
        %v591 = vmax.f32 %v554, 0.0
        %v592 = vmax.f32 %v556, 0.0
        %v593 = vmax.f32 %v559, 0.0
        %v594 = vmax.f32 %v561, 0.0
        %v595 = vlaneseq
        %v596 = vshrl.u32 %v595, 7
        %v597 = vadd.s32 %v596, 8
        %v598 = vadd.s32 %v596, 16
        %v599 = vadd.s32 %v596, 24
        %v600 = vadd.s32 %v596, 32
        %v601 = vadd.s32 %v596, 40
        %v602 = vadd.s32 %v596, 48
        %v603 = vadd.s32 %v596, 56
        %v604 = vadd.s32 %v596, 64
        %v605 = vadd.s32 %v596, 72
        %v606 = vadd.s32 %v596, 80
        %v607 = vadd.s32 %v596, 88
        %v608 = vadd.s32 %v596, 96
        %v609 = vadd.s32 %v596, 104
        %v610 = vadd.s32 %v596, 112
        %v611 = vadd.s32 %v596, 120
        %v612 = vadd.s32 %v596, 128
        %v613 = vadd.s32 %v596, 136
        %v614 = vadd.s32 %v596, 144
        %v615 = vadd.s32 %v596, 152
        %v616 = vadd.s32 %v596, 160
        %v617 = vadd.s32 %v596, 168
        %v618 = vadd.s32 %v596, 176
        %v619 = vadd.s32 %v596, 184
        %v620 = vadd.s32 %v596, 192
        %v621 = vadd.s32 %v596, 200
        %v622 = vadd.s32 %v596, 208
        %v623 = vadd.s32 %v596, 216
        %v624 = vadd.s32 %v596, 224
        %v625 = vadd.s32 %v596, 232
        %v626 = vadd.s32 %v596, 240
        %v627 = vadd.s32 %v596, 248
        %vm628 = vcmp.lt.s32.totalorder %v596, 0
        %v629 = vsub.s32 0, %v596
        %v630 = vsel %vm628, %v629, %v596
        %v631 = vshrl.u32 %v630, 4
        %v632 = vand.u32 %v630, 15
        %v633 = vsub.s32 0, %v632
        %v634 = vsel %vm628, %v633, %v632
        %vm635 = vcmp.lt.s32.totalorder %v597, 0
        %v636 = vsub.s32 0, %v597
        %v637 = vsel %vm635, %v636, %v597
        %v638 = vshrl.u32 %v637, 4
        %v639 = vand.u32 %v637, 15
        %v640 = vsub.s32 0, %v639
        %v641 = vsel %vm635, %v640, %v639
        %vm642 = vcmp.lt.s32.totalorder %v598, 0
        %v643 = vsub.s32 0, %v598
        %v644 = vsel %vm642, %v643, %v598
        %v645 = vshrl.u32 %v644, 4
        %v646 = vand.u32 %v644, 15
        %v647 = vsub.s32 0, %v646
        %v648 = vsel %vm642, %v647, %v646
        %vm649 = vcmp.lt.s32.totalorder %v599, 0
        %v650 = vsub.s32 0, %v599
        %v651 = vsel %vm649, %v650, %v599
        %v652 = vshrl.u32 %v651, 4
        %v653 = vand.u32 %v651, 15
        %v654 = vsub.s32 0, %v653
        %v655 = vsel %vm649, %v654, %v653
        %vm656 = vcmp.lt.s32.totalorder %v600, 0
        %v657 = vsub.s32 0, %v600
        %v658 = vsel %vm656, %v657, %v600
        %v659 = vshrl.u32 %v658, 4
        %v660 = vand.u32 %v658, 15
        %v661 = vsub.s32 0, %v660
        %v662 = vsel %vm656, %v661, %v660
        %vm663 = vcmp.lt.s32.totalorder %v601, 0
        %v664 = vsub.s32 0, %v601
        %v665 = vsel %vm663, %v664, %v601
        %v666 = vshrl.u32 %v665, 4
        %v667 = vand.u32 %v665, 15
        %v668 = vsub.s32 0, %v667
        %v669 = vsel %vm663, %v668, %v667
        %vm670 = vcmp.lt.s32.totalorder %v602, 0
        %v671 = vsub.s32 0, %v602
        %v672 = vsel %vm670, %v671, %v602
        %v673 = vshrl.u32 %v672, 4
        %v674 = vand.u32 %v672, 15
        %v675 = vsub.s32 0, %v674
        %v676 = vsel %vm670, %v675, %v674
        %vm677 = vcmp.lt.s32.totalorder %v603, 0
        %v678 = vsub.s32 0, %v603
        %v679 = vsel %vm677, %v678, %v603
        %v680 = vshrl.u32 %v679, 4
        %v681 = vand.u32 %v679, 15
        %v682 = vsub.s32 0, %v681
        %v683 = vsel %vm677, %v682, %v681
        %vm684 = vcmp.lt.s32.totalorder %v604, 0
        %v685 = vsub.s32 0, %v604
        %v686 = vsel %vm684, %v685, %v604
        %v687 = vshrl.u32 %v686, 4
        %v688 = vand.u32 %v686, 15
        %v689 = vsub.s32 0, %v688
        %v690 = vsel %vm684, %v689, %v688
        %vm691 = vcmp.lt.s32.totalorder %v605, 0
        %v692 = vsub.s32 0, %v605
        %v693 = vsel %vm691, %v692, %v605
        %v694 = vshrl.u32 %v693, 4
        %v695 = vand.u32 %v693, 15
        %v696 = vsub.s32 0, %v695
        %v697 = vsel %vm691, %v696, %v695
        %vm698 = vcmp.lt.s32.totalorder %v606, 0
        %v699 = vsub.s32 0, %v606
        %v700 = vsel %vm698, %v699, %v606
        %v701 = vshrl.u32 %v700, 4
        %v702 = vand.u32 %v700, 15
        %v703 = vsub.s32 0, %v702
        %v704 = vsel %vm698, %v703, %v702
        %vm705 = vcmp.lt.s32.totalorder %v607, 0
        %v706 = vsub.s32 0, %v607
        %v707 = vsel %vm705, %v706, %v607
        %v708 = vshrl.u32 %v707, 4
        %v709 = vand.u32 %v707, 15
        %v710 = vsub.s32 0, %v709
        %v711 = vsel %vm705, %v710, %v709
        %vm712 = vcmp.lt.s32.totalorder %v608, 0
        %v713 = vsub.s32 0, %v608
        %v714 = vsel %vm712, %v713, %v608
        %v715 = vshrl.u32 %v714, 4
        %v716 = vand.u32 %v714, 15
        %v717 = vsub.s32 0, %v716
        %v718 = vsel %vm712, %v717, %v716
        %vm719 = vcmp.lt.s32.totalorder %v609, 0
        %v720 = vsub.s32 0, %v609
        %v721 = vsel %vm719, %v720, %v609
        %v722 = vshrl.u32 %v721, 4
        %v723 = vand.u32 %v721, 15
        %v724 = vsub.s32 0, %v723
        %v725 = vsel %vm719, %v724, %v723
        %vm726 = vcmp.lt.s32.totalorder %v610, 0
        %v727 = vsub.s32 0, %v610
        %v728 = vsel %vm726, %v727, %v610
        %v729 = vshrl.u32 %v728, 4
        %v730 = vand.u32 %v728, 15
        %v731 = vsub.s32 0, %v730
        %v732 = vsel %vm726, %v731, %v730
        %vm733 = vcmp.lt.s32.totalorder %v611, 0
        %v734 = vsub.s32 0, %v611
        %v735 = vsel %vm733, %v734, %v611
        %v736 = vshrl.u32 %v735, 4
        %v737 = vand.u32 %v735, 15
        %v738 = vsub.s32 0, %v737
        %v739 = vsel %vm733, %v738, %v737
        %vm740 = vcmp.lt.s32.totalorder %v612, 0
        %v741 = vsub.s32 0, %v612
        %v742 = vsel %vm740, %v741, %v612
        %v743 = vshrl.u32 %v742, 4
        %v744 = vand.u32 %v742, 15
        %v745 = vsub.s32 0, %v744
        %v746 = vsel %vm740, %v745, %v744
        %vm747 = vcmp.lt.s32.totalorder %v613, 0
        %v748 = vsub.s32 0, %v613
        %v749 = vsel %vm747, %v748, %v613
        %v750 = vshrl.u32 %v749, 4
        %v751 = vand.u32 %v749, 15
        %v752 = vsub.s32 0, %v751
        %v753 = vsel %vm747, %v752, %v751
        %vm754 = vcmp.lt.s32.totalorder %v614, 0
        %v755 = vsub.s32 0, %v614
        %v756 = vsel %vm754, %v755, %v614
        %v757 = vshrl.u32 %v756, 4
        %v758 = vand.u32 %v756, 15
        %v759 = vsub.s32 0, %v758
        %v760 = vsel %vm754, %v759, %v758
        %vm761 = vcmp.lt.s32.totalorder %v615, 0
        %v762 = vsub.s32 0, %v615
        %v763 = vsel %vm761, %v762, %v615
        %v764 = vshrl.u32 %v763, 4
        %v765 = vand.u32 %v763, 15
        %v766 = vsub.s32 0, %v765
        %v767 = vsel %vm761, %v766, %v765
        %vm768 = vcmp.lt.s32.totalorder %v616, 0
        %v769 = vsub.s32 0, %v616
        %v770 = vsel %vm768, %v769, %v616
        %v771 = vshrl.u32 %v770, 4
        %v772 = vand.u32 %v770, 15
        %v773 = vsub.s32 0, %v772
        %v774 = vsel %vm768, %v773, %v772
        %vm775 = vcmp.lt.s32.totalorder %v617, 0
        %v776 = vsub.s32 0, %v617
        %v777 = vsel %vm775, %v776, %v617
        %v778 = vshrl.u32 %v777, 4
        %v779 = vand.u32 %v777, 15
        %v780 = vsub.s32 0, %v779
        %v781 = vsel %vm775, %v780, %v779
        %vm782 = vcmp.lt.s32.totalorder %v618, 0
        %v783 = vsub.s32 0, %v618
        %v784 = vsel %vm782, %v783, %v618
        %v785 = vshrl.u32 %v784, 4
        %v786 = vand.u32 %v784, 15
        %v787 = vsub.s32 0, %v786
        %v788 = vsel %vm782, %v787, %v786
        %vm789 = vcmp.lt.s32.totalorder %v619, 0
        %v790 = vsub.s32 0, %v619
        %v791 = vsel %vm789, %v790, %v619
        %v792 = vshrl.u32 %v791, 4
        %v793 = vand.u32 %v791, 15
        %v794 = vsub.s32 0, %v793
        %v795 = vsel %vm789, %v794, %v793
        %vm796 = vcmp.lt.s32.totalorder %v620, 0
        %v797 = vsub.s32 0, %v620
        %v798 = vsel %vm796, %v797, %v620
        %v799 = vshrl.u32 %v798, 4
        %v800 = vand.u32 %v798, 15
        %v801 = vsub.s32 0, %v800
        %v802 = vsel %vm796, %v801, %v800
        %vm803 = vcmp.lt.s32.totalorder %v621, 0
        %v804 = vsub.s32 0, %v621
        %v805 = vsel %vm803, %v804, %v621
        %v806 = vshrl.u32 %v805, 4
        %v807 = vand.u32 %v805, 15
        %v808 = vsub.s32 0, %v807
        %v809 = vsel %vm803, %v808, %v807
        %vm810 = vcmp.lt.s32.totalorder %v622, 0
        %v811 = vsub.s32 0, %v622
        %v812 = vsel %vm810, %v811, %v622
        %v813 = vshrl.u32 %v812, 4
        %v814 = vand.u32 %v812, 15
        %v815 = vsub.s32 0, %v814
        %v816 = vsel %vm810, %v815, %v814
        %vm817 = vcmp.lt.s32.totalorder %v623, 0
        %v818 = vsub.s32 0, %v623
        %v819 = vsel %vm817, %v818, %v623
        %v820 = vshrl.u32 %v819, 4
        %v821 = vand.u32 %v819, 15
        %v822 = vsub.s32 0, %v821
        %v823 = vsel %vm817, %v822, %v821
        %vm824 = vcmp.lt.s32.totalorder %v624, 0
        %v825 = vsub.s32 0, %v624
        %v826 = vsel %vm824, %v825, %v624
        %v827 = vshrl.u32 %v826, 4
        %v828 = vand.u32 %v826, 15
        %v829 = vsub.s32 0, %v828
        %v830 = vsel %vm824, %v829, %v828
        %vm831 = vcmp.lt.s32.totalorder %v625, 0
        %v832 = vsub.s32 0, %v625
        %v833 = vsel %vm831, %v832, %v625
        %v834 = vshrl.u32 %v833, 4
        %v835 = vand.u32 %v833, 15
        %v836 = vsub.s32 0, %v835
        %v837 = vsel %vm831, %v836, %v835
        %vm838 = vcmp.lt.s32.totalorder %v626, 0
        %v839 = vsub.s32 0, %v626
        %v840 = vsel %vm838, %v839, %v626
        %v841 = vshrl.u32 %v840, 4
        %v842 = vand.u32 %v840, 15
        %v843 = vsub.s32 0, %v842
        %v844 = vsel %vm838, %v843, %v842
        %vm845 = vcmp.lt.s32.totalorder %v627, 0
        %v846 = vsub.s32 0, %v627
        %v847 = vsel %vm845, %v846, %v627
        %v848 = vshrl.u32 %v847, 4
        %v849 = vand.u32 %v847, 15
        %v850 = vsub.s32 0, %v849
        %v851 = vsel %vm845, %v850, %v849
        %vm852 = vcmp.ne.s32.totalorder %v634, 0
        %vm853 = vcmp.ne.s32.totalorder %v641, 0
        %vm854 = vcmp.ne.s32.totalorder %v648, 0
        %vm855 = vcmp.ne.s32.totalorder %v655, 0
        %vm856 = vcmp.ne.s32.totalorder %v662, 0
        %vm857 = vcmp.ne.s32.totalorder %v669, 0
        %vm858 = vcmp.ne.s32.totalorder %v676, 0
        %vm859 = vcmp.ne.s32.totalorder %v683, 0
        %vm860 = vcmp.ne.s32.totalorder %v690, 0
        %vm861 = vcmp.ne.s32.totalorder %v697, 0
        %vm862 = vcmp.ne.s32.totalorder %v704, 0
        %vm863 = vcmp.ne.s32.totalorder %v711, 0
        %vm864 = vcmp.ne.s32.totalorder %v718, 0
        %vm865 = vcmp.ne.s32.totalorder %v725, 0
        %vm866 = vcmp.ne.s32.totalorder %v732, 0
        %vm867 = vcmp.ne.s32.totalorder %v739, 0
        %vm868 = vcmp.ne.s32.totalorder %v746, 0
        %vm869 = vcmp.ne.s32.totalorder %v753, 0
        %vm870 = vcmp.ne.s32.totalorder %v760, 0
        %vm871 = vcmp.ne.s32.totalorder %v767, 0
        %vm872 = vcmp.ne.s32.totalorder %v774, 0
        %vm873 = vcmp.ne.s32.totalorder %v781, 0
        %vm874 = vcmp.ne.s32.totalorder %v788, 0
        %vm875 = vcmp.ne.s32.totalorder %v795, 0
        %vm876 = vcmp.ne.s32.totalorder %v802, 0
        %vm877 = vcmp.ne.s32.totalorder %v809, 0
        %vm878 = vcmp.ne.s32.totalorder %v816, 0
        %vm879 = vcmp.ne.s32.totalorder %v823, 0
        %vm880 = vcmp.ne.s32.totalorder %v830, 0
        %vm881 = vcmp.ne.s32.totalorder %v837, 0
        %vm882 = vcmp.ne.s32.totalorder %v844, 0
        %vm883 = vcmp.ne.s32.totalorder %v851, 0
        %vm884 = vcmp.lt.s32.totalorder %v634, 0
        %vm885 = vcmp.lt.s32.totalorder %v641, 0
        %vm886 = vcmp.lt.s32.totalorder %v648, 0
        %vm887 = vcmp.lt.s32.totalorder %v655, 0
        %vm888 = vcmp.lt.s32.totalorder %v662, 0
        %vm889 = vcmp.lt.s32.totalorder %v669, 0
        %vm890 = vcmp.lt.s32.totalorder %v676, 0
        %vm891 = vcmp.lt.s32.totalorder %v683, 0
        %vm892 = vcmp.lt.s32.totalorder %v690, 0
        %vm893 = vcmp.lt.s32.totalorder %v697, 0
        %vm894 = vcmp.lt.s32.totalorder %v704, 0
        %vm895 = vcmp.lt.s32.totalorder %v711, 0
        %vm896 = vcmp.lt.s32.totalorder %v718, 0
        %vm897 = vcmp.lt.s32.totalorder %v725, 0
        %vm898 = vcmp.lt.s32.totalorder %v732, 0
        %vm899 = vcmp.lt.s32.totalorder %v739, 0
        %vm900 = vcmp.lt.s32.totalorder %v746, 0
        %vm901 = vcmp.lt.s32.totalorder %v753, 0
        %vm902 = vcmp.lt.s32.totalorder %v760, 0
        %vm903 = vcmp.lt.s32.totalorder %v767, 0
        %vm904 = vcmp.lt.s32.totalorder %v774, 0
        %vm905 = vcmp.lt.s32.totalorder %v781, 0
        %vm906 = vcmp.lt.s32.totalorder %v788, 0
        %vm907 = vcmp.lt.s32.totalorder %v795, 0
        %vm908 = vcmp.lt.s32.totalorder %v802, 0
        %vm909 = vcmp.lt.s32.totalorder %v809, 0
        %vm910 = vcmp.lt.s32.totalorder %v816, 0
        %vm911 = vcmp.lt.s32.totalorder %v823, 0
        %vm912 = vcmp.lt.s32.totalorder %v830, 0
        %vm913 = vcmp.lt.s32.totalorder %v837, 0
        %vm914 = vcmp.lt.s32.totalorder %v844, 0
        %vm915 = vcmp.lt.s32.totalorder %v851, 0
        %vm916 = vmand %vm884, %vm852
        %vm917 = vmand %vm885, %vm853
        %vm918 = vmand %vm886, %vm854
        %vm919 = vmand %vm887, %vm855
        %vm920 = vmand %vm888, %vm856
        %vm921 = vmand %vm889, %vm857
        %vm922 = vmand %vm890, %vm858
        %vm923 = vmand %vm891, %vm859
        %vm924 = vmand %vm892, %vm860
        %vm925 = vmand %vm893, %vm861
        %vm926 = vmand %vm894, %vm862
        %vm927 = vmand %vm895, %vm863
        %vm928 = vmand %vm896, %vm864
        %vm929 = vmand %vm897, %vm865
        %vm930 = vmand %vm898, %vm866
        %vm931 = vmand %vm899, %vm867
        %vm932 = vmand %vm900, %vm868
        %vm933 = vmand %vm901, %vm869
        %vm934 = vmand %vm902, %vm870
        %vm935 = vmand %vm903, %vm871
        %vm936 = vmand %vm904, %vm872
        %vm937 = vmand %vm905, %vm873
        %vm938 = vmand %vm906, %vm874
        %vm939 = vmand %vm907, %vm875
        %vm940 = vmand %vm908, %vm876
        %vm941 = vmand %vm909, %vm877
        %vm942 = vmand %vm910, %vm878
        %vm943 = vmand %vm911, %vm879
        %vm944 = vmand %vm912, %vm880
        %vm945 = vmand %vm913, %vm881
        %vm946 = vmand %vm914, %vm882
        %vm947 = vmand %vm915, %vm883
        %v948 = vadd.s32 %v634, 16
        %v949 = vadd.s32 %v641, 16
        %v950 = vadd.s32 %v648, 16
        %v951 = vadd.s32 %v655, 16
        %v952 = vadd.s32 %v662, 16
        %v953 = vadd.s32 %v669, 16
        %v954 = vadd.s32 %v676, 16
        %v955 = vadd.s32 %v683, 16
        %v956 = vadd.s32 %v690, 16
        %v957 = vadd.s32 %v697, 16
        %v958 = vadd.s32 %v704, 16
        %v959 = vadd.s32 %v711, 16
        %v960 = vadd.s32 %v718, 16
        %v961 = vadd.s32 %v725, 16
        %v962 = vadd.s32 %v732, 16
        %v963 = vadd.s32 %v739, 16
        %v964 = vadd.s32 %v746, 16
        %v965 = vadd.s32 %v753, 16
        %v966 = vadd.s32 %v760, 16
        %v967 = vadd.s32 %v767, 16
        %v968 = vadd.s32 %v774, 16
        %v969 = vadd.s32 %v781, 16
        %v970 = vadd.s32 %v788, 16
        %v971 = vadd.s32 %v795, 16
        %v972 = vadd.s32 %v802, 16
        %v973 = vadd.s32 %v809, 16
        %v974 = vadd.s32 %v816, 16
        %v975 = vadd.s32 %v823, 16
        %v976 = vadd.s32 %v830, 16
        %v977 = vadd.s32 %v837, 16
        %v978 = vadd.s32 %v844, 16
        %v979 = vadd.s32 %v851, 16
        %v980 = vsel %vm916, %v948, %v634
        %v981 = vsel %vm917, %v949, %v641
        %v982 = vsel %vm918, %v950, %v648
        %v983 = vsel %vm919, %v951, %v655
        %v984 = vsel %vm920, %v952, %v662
        %v985 = vsel %vm921, %v953, %v669
        %v986 = vsel %vm922, %v954, %v676
        %v987 = vsel %vm923, %v955, %v683
        %v988 = vsel %vm924, %v956, %v690
        %v989 = vsel %vm925, %v957, %v697
        %v990 = vsel %vm926, %v958, %v704
        %v991 = vsel %vm927, %v959, %v711
        %v992 = vsel %vm928, %v960, %v718
        %v993 = vsel %vm929, %v961, %v725
        %v994 = vsel %vm930, %v962, %v732
        %v995 = vsel %vm931, %v963, %v739
        %v996 = vsel %vm932, %v964, %v746
        %v997 = vsel %vm933, %v965, %v753
        %v998 = vsel %vm934, %v966, %v760
        %v999 = vsel %vm935, %v967, %v767
        %v1000 = vsel %vm936, %v968, %v774
        %v1001 = vsel %vm937, %v969, %v781
        %v1002 = vsel %vm938, %v970, %v788
        %v1003 = vsel %vm939, %v971, %v795
        %v1004 = vsel %vm940, %v972, %v802
        %v1005 = vsel %vm941, %v973, %v809
        %v1006 = vsel %vm942, %v974, %v816
        %v1007 = vsel %vm943, %v975, %v823
        %v1008 = vsel %vm944, %v976, %v830
        %v1009 = vsel %vm945, %v977, %v837
        %v1010 = vsel %vm946, %v978, %v844
        %v1011 = vsel %vm947, %v979, %v851
        %vm1012 = vcmp.ne.s32.totalorder %v980, 0
        %vm1013 = vcmp.ne.s32.totalorder %v981, 0
        %vm1014 = vcmp.ne.s32.totalorder %v982, 0
        %vm1015 = vcmp.ne.s32.totalorder %v983, 0
        %vm1016 = vcmp.ne.s32.totalorder %v984, 0
        %vm1017 = vcmp.ne.s32.totalorder %v985, 0
        %vm1018 = vcmp.ne.s32.totalorder %v986, 0
        %vm1019 = vcmp.ne.s32.totalorder %v987, 0
        %vm1020 = vcmp.ne.s32.totalorder %v988, 0
        %vm1021 = vcmp.ne.s32.totalorder %v989, 0
        %vm1022 = vcmp.ne.s32.totalorder %v990, 0
        %vm1023 = vcmp.ne.s32.totalorder %v991, 0
        %vm1024 = vcmp.ne.s32.totalorder %v992, 0
        %vm1025 = vcmp.ne.s32.totalorder %v993, 0
        %vm1026 = vcmp.ne.s32.totalorder %v994, 0
        %vm1027 = vcmp.ne.s32.totalorder %v995, 0
        %vm1028 = vcmp.ne.s32.totalorder %v996, 0
        %vm1029 = vcmp.ne.s32.totalorder %v997, 0
        %vm1030 = vcmp.ne.s32.totalorder %v998, 0
        %vm1031 = vcmp.ne.s32.totalorder %v999, 0
        %vm1032 = vcmp.ne.s32.totalorder %v1000, 0
        %vm1033 = vcmp.ne.s32.totalorder %v1001, 0
        %vm1034 = vcmp.ne.s32.totalorder %v1002, 0
        %vm1035 = vcmp.ne.s32.totalorder %v1003, 0
        %vm1036 = vcmp.ne.s32.totalorder %v1004, 0
        %vm1037 = vcmp.ne.s32.totalorder %v1005, 0
        %vm1038 = vcmp.ne.s32.totalorder %v1006, 0
        %vm1039 = vcmp.ne.s32.totalorder %v1007, 0
        %vm1040 = vcmp.ne.s32.totalorder %v1008, 0
        %vm1041 = vcmp.ne.s32.totalorder %v1009, 0
        %vm1042 = vcmp.ne.s32.totalorder %v1010, 0
        %vm1043 = vcmp.ne.s32.totalorder %v1011, 0
        %vm1044 = vcmp.ne.s32.totalorder %v980, 15
        %vm1045 = vcmp.ne.s32.totalorder %v981, 15
        %vm1046 = vcmp.ne.s32.totalorder %v982, 15
        %vm1047 = vcmp.ne.s32.totalorder %v983, 15
        %vm1048 = vcmp.ne.s32.totalorder %v984, 15
        %vm1049 = vcmp.ne.s32.totalorder %v985, 15
        %vm1050 = vcmp.ne.s32.totalorder %v986, 15
        %vm1051 = vcmp.ne.s32.totalorder %v987, 15
        %vm1052 = vcmp.ne.s32.totalorder %v988, 15
        %vm1053 = vcmp.ne.s32.totalorder %v989, 15
        %vm1054 = vcmp.ne.s32.totalorder %v990, 15
        %vm1055 = vcmp.ne.s32.totalorder %v991, 15
        %vm1056 = vcmp.ne.s32.totalorder %v992, 15
        %vm1057 = vcmp.ne.s32.totalorder %v993, 15
        %vm1058 = vcmp.ne.s32.totalorder %v994, 15
        %vm1059 = vcmp.ne.s32.totalorder %v995, 15
        %vm1060 = vcmp.ne.s32.totalorder %v996, 15
        %vm1061 = vcmp.ne.s32.totalorder %v997, 15
        %vm1062 = vcmp.ne.s32.totalorder %v998, 15
        %vm1063 = vcmp.ne.s32.totalorder %v999, 15
        %vm1064 = vcmp.ne.s32.totalorder %v1000, 15
        %vm1065 = vcmp.ne.s32.totalorder %v1001, 15
        %vm1066 = vcmp.ne.s32.totalorder %v1002, 15
        %vm1067 = vcmp.ne.s32.totalorder %v1003, 15
        %vm1068 = vcmp.ne.s32.totalorder %v1004, 15
        %vm1069 = vcmp.ne.s32.totalorder %v1005, 15
        %vm1070 = vcmp.ne.s32.totalorder %v1006, 15
        %vm1071 = vcmp.ne.s32.totalorder %v1007, 15
        %vm1072 = vcmp.ne.s32.totalorder %v1008, 15
        %vm1073 = vcmp.ne.s32.totalorder %v1009, 15
        %vm1074 = vcmp.ne.s32.totalorder %v1010, 15
        %vm1075 = vcmp.ne.s32.totalorder %v1011, 15
        %vm1076 = vcmp.ge.s32.totalorder %v596, 16
        %vm1077 = vcmp.ge.s32.totalorder %v597, 16
        %vm1078 = vcmp.ge.s32.totalorder %v598, 16
        %vm1079 = vcmp.ge.s32.totalorder %v599, 16
        %vm1080 = vcmp.ge.s32.totalorder %v600, 16
        %vm1081 = vcmp.ge.s32.totalorder %v601, 16
        %vm1082 = vcmp.ge.s32.totalorder %v602, 16
        %vm1083 = vcmp.ge.s32.totalorder %v603, 16
        %vm1084 = vcmp.ge.s32.totalorder %v604, 16
        %vm1085 = vcmp.ge.s32.totalorder %v605, 16
        %vm1086 = vcmp.ge.s32.totalorder %v606, 16
        %vm1087 = vcmp.ge.s32.totalorder %v607, 16
        %vm1088 = vcmp.ge.s32.totalorder %v608, 16
        %vm1089 = vcmp.ge.s32.totalorder %v609, 16
        %vm1090 = vcmp.ge.s32.totalorder %v610, 16
        %vm1091 = vcmp.ge.s32.totalorder %v611, 16
        %vm1092 = vcmp.ge.s32.totalorder %v612, 16
        %vm1093 = vcmp.ge.s32.totalorder %v613, 16
        %vm1094 = vcmp.ge.s32.totalorder %v614, 16
        %vm1095 = vcmp.ge.s32.totalorder %v615, 16
        %vm1096 = vcmp.ge.s32.totalorder %v616, 16
        %vm1097 = vcmp.ge.s32.totalorder %v617, 16
        %vm1098 = vcmp.ge.s32.totalorder %v618, 16
        %vm1099 = vcmp.ge.s32.totalorder %v619, 16
        %vm1100 = vcmp.ge.s32.totalorder %v620, 16
        %vm1101 = vcmp.ge.s32.totalorder %v621, 16
        %vm1102 = vcmp.ge.s32.totalorder %v622, 16
        %vm1103 = vcmp.ge.s32.totalorder %v623, 16
        %vm1104 = vcmp.ge.s32.totalorder %v624, 16
        %vm1105 = vcmp.ge.s32.totalorder %v625, 16
        %vm1106 = vcmp.ge.s32.totalorder %v626, 16
        %vm1107 = vcmp.ge.s32.totalorder %v627, 16
        %vm1108 = vcmp.lt.s32.totalorder %v596, 240
        %vm1109 = vcmp.lt.s32.totalorder %v597, 240
        %vm1110 = vcmp.lt.s32.totalorder %v598, 240
        %vm1111 = vcmp.lt.s32.totalorder %v599, 240
        %vm1112 = vcmp.lt.s32.totalorder %v600, 240
        %vm1113 = vcmp.lt.s32.totalorder %v601, 240
        %vm1114 = vcmp.lt.s32.totalorder %v602, 240
        %vm1115 = vcmp.lt.s32.totalorder %v603, 240
        %vm1116 = vcmp.lt.s32.totalorder %v604, 240
        %vm1117 = vcmp.lt.s32.totalorder %v605, 240
        %vm1118 = vcmp.lt.s32.totalorder %v606, 240
        %vm1119 = vcmp.lt.s32.totalorder %v607, 240
        %vm1120 = vcmp.lt.s32.totalorder %v608, 240
        %vm1121 = vcmp.lt.s32.totalorder %v609, 240
        %vm1122 = vcmp.lt.s32.totalorder %v610, 240
        %vm1123 = vcmp.lt.s32.totalorder %v611, 240
        %vm1124 = vcmp.lt.s32.totalorder %v612, 240
        %vm1125 = vcmp.lt.s32.totalorder %v613, 240
        %vm1126 = vcmp.lt.s32.totalorder %v614, 240
        %vm1127 = vcmp.lt.s32.totalorder %v615, 240
        %vm1128 = vcmp.lt.s32.totalorder %v616, 240
        %vm1129 = vcmp.lt.s32.totalorder %v617, 240
        %vm1130 = vcmp.lt.s32.totalorder %v618, 240
        %vm1131 = vcmp.lt.s32.totalorder %v619, 240
        %vm1132 = vcmp.lt.s32.totalorder %v620, 240
        %vm1133 = vcmp.lt.s32.totalorder %v621, 240
        %vm1134 = vcmp.lt.s32.totalorder %v622, 240
        %vm1135 = vcmp.lt.s32.totalorder %v623, 240
        %vm1136 = vcmp.lt.s32.totalorder %v624, 240
        %vm1137 = vcmp.lt.s32.totalorder %v625, 240
        %vm1138 = vcmp.lt.s32.totalorder %v626, 240
        %vm1139 = vcmp.lt.s32.totalorder %v627, 240
        %v1140 = vrot.slane %v563, 7
        %v1141 = vrot.slane %v564, 7
        %v1142 = vrot.slane %v565, 7
        %v1143 = vrot.slane %v566, 7
        %v1144 = vrot.slane %v567, 7
        %v1145 = vrot.slane %v568, 7
        %v1146 = vrot.slane %v569, 7
        %v1147 = vrot.slane %v570, 7
        %v1148 = vrot.slane %v571, 7
        %v1149 = vrot.slane %v572, 7
        %v1150 = vrot.slane %v573, 7
        %v1151 = vrot.slane %v574, 7
        %v1152 = vrot.slane %v575, 7
        %v1153 = vrot.slane %v576, 7
        %v1154 = vrot.slane %v577, 7
        %v1155 = vrot.slane %v578, 7
        %v1156 = vrot.slane %v579, 7
        %v1157 = vrot.slane %v580, 7
        %v1158 = vrot.slane %v581, 7
        %v1159 = vrot.slane %v582, 7
        %v1160 = vrot.slane %v583, 7
        %v1161 = vrot.slane %v584, 7
        %v1162 = vrot.slane %v585, 7
        %v1163 = vrot.slane %v586, 7
        %v1164 = vrot.slane %v587, 7
        %v1165 = vrot.slane %v588, 7
        %v1166 = vrot.slane %v589, 7
        %v1167 = vrot.slane %v590, 7
        %v1168 = vrot.slane %v591, 7
        %v1169 = vrot.slane %v592, 7
        %v1170 = vrot.slane %v593, 7
        %v1171 = vrot.slane %v594, 7
        %vm1172 = vcmp.lt.s32.totalorder %v596, 1
        %v1173 = vsel %vm1172, %v1170, %v1171
        %v1174 = vsel %vm1172, %v1169, %v1170
        %v1175 = vsel %vm1172, %v1168, %v1169
        %v1176 = vsel %vm1172, %v1167, %v1168
        %v1177 = vsel %vm1172, %v1166, %v1167
        %v1178 = vsel %vm1172, %v1165, %v1166
        %v1179 = vsel %vm1172, %v1164, %v1165
        %v1180 = vsel %vm1172, %v1163, %v1164
        %v1181 = vsel %vm1172, %v1162, %v1163
        %v1182 = vsel %vm1172, %v1161, %v1162
        %v1183 = vsel %vm1172, %v1160, %v1161
        %v1184 = vsel %vm1172, %v1159, %v1160
        %v1185 = vsel %vm1172, %v1158, %v1159
        %v1186 = vsel %vm1172, %v1157, %v1158
        %v1187 = vsel %vm1172, %v1156, %v1157
        %v1188 = vsel %vm1172, %v1155, %v1156
        %v1189 = vsel %vm1172, %v1154, %v1155
        %v1190 = vsel %vm1172, %v1153, %v1154
        %v1191 = vsel %vm1172, %v1152, %v1153
        %v1192 = vsel %vm1172, %v1151, %v1152
        %v1193 = vsel %vm1172, %v1150, %v1151
        %v1194 = vsel %vm1172, %v1149, %v1150
        %v1195 = vsel %vm1172, %v1148, %v1149
        %v1196 = vsel %vm1172, %v1147, %v1148
        %v1197 = vsel %vm1172, %v1146, %v1147
        %v1198 = vsel %vm1172, %v1145, %v1146
        %v1199 = vsel %vm1172, %v1144, %v1145
        %v1200 = vsel %vm1172, %v1143, %v1144
        %v1201 = vsel %vm1172, %v1142, %v1143
        %v1202 = vsel %vm1172, %v1141, %v1142
        %v1203 = vsel %vm1172, %v1140, %v1141
        %v1204 = vsel %vm1172, %v1171, %v1140
        %v1205 = vsel %vm1012, 1, 0
        %v1206 = vsel %vm1013, 1, 0
        %v1207 = vsel %vm1014, 1, 0
        %v1208 = vsel %vm1015, 1, 0
        %v1209 = vsel %vm1016, 1, 0
        %v1210 = vsel %vm1017, 1, 0
        %v1211 = vsel %vm1018, 1, 0
        %v1212 = vsel %vm1019, 1, 0
        %v1213 = vsel %vm1020, 1, 0
        %v1214 = vsel %vm1021, 1, 0
        %v1215 = vsel %vm1022, 1, 0
        %v1216 = vsel %vm1023, 1, 0
        %v1217 = vsel %vm1024, 1, 0
        %v1218 = vsel %vm1025, 1, 0
        %v1219 = vsel %vm1026, 1, 0
        %v1220 = vsel %vm1027, 1, 0
        %v1221 = vsel %vm1028, 1, 0
        %v1222 = vsel %vm1029, 1, 0
        %v1223 = vsel %vm1030, 1, 0
        %v1224 = vsel %vm1031, 1, 0
        %v1225 = vsel %vm1032, 1, 0
        %v1226 = vsel %vm1033, 1, 0
        %v1227 = vsel %vm1034, 1, 0
        %v1228 = vsel %vm1035, 1, 0
        %v1229 = vsel %vm1036, 1, 0
        %v1230 = vsel %vm1037, 1, 0
        %v1231 = vsel %vm1038, 1, 0
        %v1232 = vsel %vm1039, 1, 0
        %v1233 = vsel %vm1040, 1, 0
        %v1234 = vsel %vm1041, 1, 0
        %v1235 = vsel %vm1042, 1, 0
        %v1236 = vsel %vm1043, 1, 0
        %vm1237 = vcmp.eq.s32.totalorder %v1205, 1
        %vm1238 = vcmp.eq.s32.totalorder %v1206, 1
        %vm1239 = vcmp.eq.s32.totalorder %v1207, 1
        %vm1240 = vcmp.eq.s32.totalorder %v1208, 1
        %vm1241 = vcmp.eq.s32.totalorder %v1209, 1
        %vm1242 = vcmp.eq.s32.totalorder %v1210, 1
        %vm1243 = vcmp.eq.s32.totalorder %v1211, 1
        %vm1244 = vcmp.eq.s32.totalorder %v1212, 1
        %vm1245 = vcmp.eq.s32.totalorder %v1213, 1
        %vm1246 = vcmp.eq.s32.totalorder %v1214, 1
        %vm1247 = vcmp.eq.s32.totalorder %v1215, 1
        %vm1248 = vcmp.eq.s32.totalorder %v1216, 1
        %vm1249 = vcmp.eq.s32.totalorder %v1217, 1
        %vm1250 = vcmp.eq.s32.totalorder %v1218, 1
        %vm1251 = vcmp.eq.s32.totalorder %v1219, 1
        %vm1252 = vcmp.eq.s32.totalorder %v1220, 1
        %vm1253 = vcmp.eq.s32.totalorder %v1221, 1
        %vm1254 = vcmp.eq.s32.totalorder %v1222, 1
        %vm1255 = vcmp.eq.s32.totalorder %v1223, 1
        %vm1256 = vcmp.eq.s32.totalorder %v1224, 1
        %vm1257 = vcmp.eq.s32.totalorder %v1225, 1
        %vm1258 = vcmp.eq.s32.totalorder %v1226, 1
        %vm1259 = vcmp.eq.s32.totalorder %v1227, 1
        %vm1260 = vcmp.eq.s32.totalorder %v1228, 1
        %vm1261 = vcmp.eq.s32.totalorder %v1229, 1
        %vm1262 = vcmp.eq.s32.totalorder %v1230, 1
        %vm1263 = vcmp.eq.s32.totalorder %v1231, 1
        %vm1264 = vcmp.eq.s32.totalorder %v1232, 1
        %vm1265 = vcmp.eq.s32.totalorder %v1233, 1
        %vm1266 = vcmp.eq.s32.totalorder %v1234, 1
        %vm1267 = vcmp.eq.s32.totalorder %v1235, 1
        %vm1268 = vcmp.eq.s32.totalorder %v1236, 1
        %v1269 = vsel %vm1237, %v1204, 0.0
        %v1270 = vsel %vm1238, %v1203, 0.0
        %v1271 = vsel %vm1239, %v1202, 0.0
        %v1272 = vsel %vm1240, %v1201, 0.0
        %v1273 = vsel %vm1241, %v1200, 0.0
        %v1274 = vsel %vm1242, %v1199, 0.0
        %v1275 = vsel %vm1243, %v1198, 0.0
        %v1276 = vsel %vm1244, %v1197, 0.0
        %v1277 = vsel %vm1245, %v1196, 0.0
        %v1278 = vsel %vm1246, %v1195, 0.0
        %v1279 = vsel %vm1247, %v1194, 0.0
        %v1280 = vsel %vm1248, %v1193, 0.0
        %v1281 = vsel %vm1249, %v1192, 0.0
        %v1282 = vsel %vm1250, %v1191, 0.0
        %v1283 = vsel %vm1251, %v1190, 0.0
        %v1284 = vsel %vm1252, %v1189, 0.0
        %v1285 = vsel %vm1253, %v1188, 0.0
        %v1286 = vsel %vm1254, %v1187, 0.0
        %v1287 = vsel %vm1255, %v1186, 0.0
        %v1288 = vsel %vm1256, %v1185, 0.0
        %v1289 = vsel %vm1257, %v1184, 0.0
        %v1290 = vsel %vm1258, %v1183, 0.0
        %v1291 = vsel %vm1259, %v1182, 0.0
        %v1292 = vsel %vm1260, %v1181, 0.0
        %v1293 = vsel %vm1261, %v1180, 0.0
        %v1294 = vsel %vm1262, %v1179, 0.0
        %v1295 = vsel %vm1263, %v1178, 0.0
        %v1296 = vsel %vm1264, %v1177, 0.0
        %v1297 = vsel %vm1265, %v1176, 0.0
        %v1298 = vsel %vm1266, %v1175, 0.0
        %v1299 = vsel %vm1267, %v1174, 0.0
        %v1300 = vsel %vm1268, %v1173, 0.0
        %v1301 = vrot.slane %v563, 1
        %v1302 = vrot.slane %v564, 1
        %v1303 = vrot.slane %v565, 1
        %v1304 = vrot.slane %v566, 1
        %v1305 = vrot.slane %v567, 1
        %v1306 = vrot.slane %v568, 1
        %v1307 = vrot.slane %v569, 1
        %v1308 = vrot.slane %v570, 1
        %v1309 = vrot.slane %v571, 1
        %v1310 = vrot.slane %v572, 1
        %v1311 = vrot.slane %v573, 1
        %v1312 = vrot.slane %v574, 1
        %v1313 = vrot.slane %v575, 1
        %v1314 = vrot.slane %v576, 1
        %v1315 = vrot.slane %v577, 1
        %v1316 = vrot.slane %v578, 1
        %v1317 = vrot.slane %v579, 1
        %v1318 = vrot.slane %v580, 1
        %v1319 = vrot.slane %v581, 1
        %v1320 = vrot.slane %v582, 1
        %v1321 = vrot.slane %v583, 1
        %v1322 = vrot.slane %v584, 1
        %v1323 = vrot.slane %v585, 1
        %v1324 = vrot.slane %v586, 1
        %v1325 = vrot.slane %v587, 1
        %v1326 = vrot.slane %v588, 1
        %v1327 = vrot.slane %v589, 1
        %v1328 = vrot.slane %v590, 1
        %v1329 = vrot.slane %v591, 1
        %v1330 = vrot.slane %v592, 1
        %v1331 = vrot.slane %v593, 1
        %v1332 = vrot.slane %v594, 1
        %vm1333 = vcmp.lt.s32.totalorder %v596, 7
        %v1334 = vsel %vm1333, %v1331, %v1332
        %v1335 = vsel %vm1333, %v1330, %v1331
        %v1336 = vsel %vm1333, %v1329, %v1330
        %v1337 = vsel %vm1333, %v1328, %v1329
        %v1338 = vsel %vm1333, %v1327, %v1328
        %v1339 = vsel %vm1333, %v1326, %v1327
        %v1340 = vsel %vm1333, %v1325, %v1326
        %v1341 = vsel %vm1333, %v1324, %v1325
        %v1342 = vsel %vm1333, %v1323, %v1324
        %v1343 = vsel %vm1333, %v1322, %v1323
        %v1344 = vsel %vm1333, %v1321, %v1322
        %v1345 = vsel %vm1333, %v1320, %v1321
        %v1346 = vsel %vm1333, %v1319, %v1320
        %v1347 = vsel %vm1333, %v1318, %v1319
        %v1348 = vsel %vm1333, %v1317, %v1318
        %v1349 = vsel %vm1333, %v1316, %v1317
        %v1350 = vsel %vm1333, %v1315, %v1316
        %v1351 = vsel %vm1333, %v1314, %v1315
        %v1352 = vsel %vm1333, %v1313, %v1314
        %v1353 = vsel %vm1333, %v1312, %v1313
        %v1354 = vsel %vm1333, %v1311, %v1312
        %v1355 = vsel %vm1333, %v1310, %v1311
        %v1356 = vsel %vm1333, %v1309, %v1310
        %v1357 = vsel %vm1333, %v1308, %v1309
        %v1358 = vsel %vm1333, %v1307, %v1308
        %v1359 = vsel %vm1333, %v1306, %v1307
        %v1360 = vsel %vm1333, %v1305, %v1306
        %v1361 = vsel %vm1333, %v1304, %v1305
        %v1362 = vsel %vm1333, %v1303, %v1304
        %v1363 = vsel %vm1333, %v1302, %v1303
        %v1364 = vsel %vm1333, %v1301, %v1302
        %v1365 = vsel %vm1333, %v1332, %v1301
        %v1366 = vsel %vm1044, 1, 0
        %v1367 = vsel %vm1045, 1, 0
        %v1368 = vsel %vm1046, 1, 0
        %v1369 = vsel %vm1047, 1, 0
        %v1370 = vsel %vm1048, 1, 0
        %v1371 = vsel %vm1049, 1, 0
        %v1372 = vsel %vm1050, 1, 0
        %v1373 = vsel %vm1051, 1, 0
        %v1374 = vsel %vm1052, 1, 0
        %v1375 = vsel %vm1053, 1, 0
        %v1376 = vsel %vm1054, 1, 0
        %v1377 = vsel %vm1055, 1, 0
        %v1378 = vsel %vm1056, 1, 0
        %v1379 = vsel %vm1057, 1, 0
        %v1380 = vsel %vm1058, 1, 0
        %v1381 = vsel %vm1059, 1, 0
        %v1382 = vsel %vm1060, 1, 0
        %v1383 = vsel %vm1061, 1, 0
        %v1384 = vsel %vm1062, 1, 0
        %v1385 = vsel %vm1063, 1, 0
        %v1386 = vsel %vm1064, 1, 0
        %v1387 = vsel %vm1065, 1, 0
        %v1388 = vsel %vm1066, 1, 0
        %v1389 = vsel %vm1067, 1, 0
        %v1390 = vsel %vm1068, 1, 0
        %v1391 = vsel %vm1069, 1, 0
        %v1392 = vsel %vm1070, 1, 0
        %v1393 = vsel %vm1071, 1, 0
        %v1394 = vsel %vm1072, 1, 0
        %v1395 = vsel %vm1073, 1, 0
        %v1396 = vsel %vm1074, 1, 0
        %v1397 = vsel %vm1075, 1, 0
        %vm1398 = vcmp.eq.s32.totalorder %v1366, 1
        %vm1399 = vcmp.eq.s32.totalorder %v1367, 1
        %vm1400 = vcmp.eq.s32.totalorder %v1368, 1
        %vm1401 = vcmp.eq.s32.totalorder %v1369, 1
        %vm1402 = vcmp.eq.s32.totalorder %v1370, 1
        %vm1403 = vcmp.eq.s32.totalorder %v1371, 1
        %vm1404 = vcmp.eq.s32.totalorder %v1372, 1
        %vm1405 = vcmp.eq.s32.totalorder %v1373, 1
        %vm1406 = vcmp.eq.s32.totalorder %v1374, 1
        %vm1407 = vcmp.eq.s32.totalorder %v1375, 1
        %vm1408 = vcmp.eq.s32.totalorder %v1376, 1
        %vm1409 = vcmp.eq.s32.totalorder %v1377, 1
        %vm1410 = vcmp.eq.s32.totalorder %v1378, 1
        %vm1411 = vcmp.eq.s32.totalorder %v1379, 1
        %vm1412 = vcmp.eq.s32.totalorder %v1380, 1
        %vm1413 = vcmp.eq.s32.totalorder %v1381, 1
        %vm1414 = vcmp.eq.s32.totalorder %v1382, 1
        %vm1415 = vcmp.eq.s32.totalorder %v1383, 1
        %vm1416 = vcmp.eq.s32.totalorder %v1384, 1
        %vm1417 = vcmp.eq.s32.totalorder %v1385, 1
        %vm1418 = vcmp.eq.s32.totalorder %v1386, 1
        %vm1419 = vcmp.eq.s32.totalorder %v1387, 1
        %vm1420 = vcmp.eq.s32.totalorder %v1388, 1
        %vm1421 = vcmp.eq.s32.totalorder %v1389, 1
        %vm1422 = vcmp.eq.s32.totalorder %v1390, 1
        %vm1423 = vcmp.eq.s32.totalorder %v1391, 1
        %vm1424 = vcmp.eq.s32.totalorder %v1392, 1
        %vm1425 = vcmp.eq.s32.totalorder %v1393, 1
        %vm1426 = vcmp.eq.s32.totalorder %v1394, 1
        %vm1427 = vcmp.eq.s32.totalorder %v1395, 1
        %vm1428 = vcmp.eq.s32.totalorder %v1396, 1
        %vm1429 = vcmp.eq.s32.totalorder %v1397, 1
        %v1430 = vsel %vm1398, %v1364, 0.0
        %v1431 = vsel %vm1399, %v1363, 0.0
        %v1432 = vsel %vm1400, %v1362, 0.0
        %v1433 = vsel %vm1401, %v1361, 0.0
        %v1434 = vsel %vm1402, %v1360, 0.0
        %v1435 = vsel %vm1403, %v1359, 0.0
        %v1436 = vsel %vm1404, %v1358, 0.0
        %v1437 = vsel %vm1405, %v1357, 0.0
        %v1438 = vsel %vm1406, %v1356, 0.0
        %v1439 = vsel %vm1407, %v1355, 0.0
        %v1440 = vsel %vm1408, %v1354, 0.0
        %v1441 = vsel %vm1409, %v1353, 0.0
        %v1442 = vsel %vm1410, %v1352, 0.0
        %v1443 = vsel %vm1411, %v1351, 0.0
        %v1444 = vsel %vm1412, %v1350, 0.0
        %v1445 = vsel %vm1413, %v1349, 0.0
        %v1446 = vsel %vm1414, %v1348, 0.0
        %v1447 = vsel %vm1415, %v1347, 0.0
        %v1448 = vsel %vm1416, %v1346, 0.0
        %v1449 = vsel %vm1417, %v1345, 0.0
        %v1450 = vsel %vm1418, %v1344, 0.0
        %v1451 = vsel %vm1419, %v1343, 0.0
        %v1452 = vsel %vm1420, %v1342, 0.0
        %v1453 = vsel %vm1421, %v1341, 0.0
        %v1454 = vsel %vm1422, %v1340, 0.0
        %v1455 = vsel %vm1423, %v1339, 0.0
        %v1456 = vsel %vm1424, %v1338, 0.0
        %v1457 = vsel %vm1425, %v1337, 0.0
        %v1458 = vsel %vm1426, %v1336, 0.0
        %v1459 = vsel %vm1427, %v1335, 0.0
        %v1460 = vsel %vm1428, %v1334, 0.0
        %v1461 = vsel %vm1429, %v1365, 0.0
        %1494 = vrot.lane.b32.xlu0 %v563, 32
        %v1495 = vpop.permute.xlu0 %1494
        %1496 = vrot.lane.b32.xlu0 %v564, 32
        %v1497 = vpop.permute.xlu0 %1496
        %1498 = vrot.lane.b32.xlu0 %v565, 32
        %v1499 = vpop.permute.xlu0 %1498
        %1500 = vrot.lane.b32.xlu0 %v566, 32
        %v1501 = vpop.permute.xlu0 %1500
        %1502 = vrot.lane.b32.xlu0 %v567, 32
        %v1503 = vpop.permute.xlu0 %1502
        %1504 = vrot.lane.b32.xlu0 %v568, 32
        %v1505 = vpop.permute.xlu0 %1504
        %1506 = vrot.lane.b32.xlu0 %v569, 32
        %v1507 = vpop.permute.xlu0 %1506
        %1508 = vrot.lane.b32.xlu0 %v570, 32
        %v1509 = vpop.permute.xlu0 %1508
        %1510 = vrot.lane.b32.xlu0 %v571, 32
        %v1511 = vpop.permute.xlu0 %1510
        %1512 = vrot.lane.b32.xlu0 %v572, 32
        %v1513 = vpop.permute.xlu0 %1512
        %1514 = vrot.lane.b32.xlu0 %v573, 32
        %v1515 = vpop.permute.xlu0 %1514
        %1516 = vrot.lane.b32.xlu0 %v574, 32
        %v1517 = vpop.permute.xlu0 %1516
        %1518 = vrot.lane.b32.xlu0 %v575, 32
        %v1519 = vpop.permute.xlu0 %1518
        %1520 = vrot.lane.b32.xlu0 %v576, 32
        %v1521 = vpop.permute.xlu0 %1520
        %1522 = vrot.lane.b32.xlu0 %v577, 32
        %v1523 = vpop.permute.xlu0 %1522
        %1524 = vrot.lane.b32.xlu0 %v578, 32
        %v1525 = vpop.permute.xlu0 %1524
        %1526 = vrot.lane.b32.xlu0 %v579, 32
        %v1527 = vpop.permute.xlu0 %1526
        %1528 = vrot.lane.b32.xlu0 %v580, 32
        %v1529 = vpop.permute.xlu0 %1528
        %1530 = vrot.lane.b32.xlu0 %v581, 32
        %v1531 = vpop.permute.xlu0 %1530
        %1532 = vrot.lane.b32.xlu0 %v582, 32
        %v1533 = vpop.permute.xlu0 %1532
        %1534 = vrot.lane.b32.xlu0 %v583, 32
        %v1535 = vpop.permute.xlu0 %1534
        %1536 = vrot.lane.b32.xlu0 %v584, 32
        %v1537 = vpop.permute.xlu0 %1536
        %1538 = vrot.lane.b32.xlu0 %v585, 32
        %v1539 = vpop.permute.xlu0 %1538
        %1540 = vrot.lane.b32.xlu0 %v586, 32
        %v1541 = vpop.permute.xlu0 %1540
        %1542 = vrot.lane.b32.xlu0 %v587, 32
        %v1543 = vpop.permute.xlu0 %1542
        %1544 = vrot.lane.b32.xlu0 %v588, 32
        %v1545 = vpop.permute.xlu0 %1544
        %1546 = vrot.lane.b32.xlu0 %v589, 32
        %v1547 = vpop.permute.xlu0 %1546
        %1548 = vrot.lane.b32.xlu0 %v590, 32
        %v1549 = vpop.permute.xlu0 %1548
        %1550 = vrot.lane.b32.xlu0 %v591, 32
        %v1551 = vpop.permute.xlu0 %1550
        %1552 = vrot.lane.b32.xlu0 %v592, 32
        %v1553 = vpop.permute.xlu0 %1552
        %1554 = vrot.lane.b32.xlu0 %v593, 32
        %v1555 = vpop.permute.xlu0 %1554
        %1556 = vrot.lane.b32.xlu0 %v594, 32
        %v1557 = vpop.permute.xlu0 %1556
        %1622 = vrot.lane.b32.xlu0 %v1430, 64
        %v1623 = vpop.permute.xlu0 %1622
        %1624 = vrot.lane.b32.xlu0 %v1431, 64
        %v1625 = vpop.permute.xlu0 %1624
        %1626 = vrot.lane.b32.xlu0 %v1432, 64
        %v1627 = vpop.permute.xlu0 %1626
        %1628 = vrot.lane.b32.xlu0 %v1433, 64
        %v1629 = vpop.permute.xlu0 %1628
        %1630 = vrot.lane.b32.xlu0 %v1434, 64
        %v1631 = vpop.permute.xlu0 %1630
        %1632 = vrot.lane.b32.xlu0 %v1435, 64
        %v1633 = vpop.permute.xlu0 %1632
        %1634 = vrot.lane.b32.xlu0 %v1436, 64
        %v1635 = vpop.permute.xlu0 %1634
        %1636 = vrot.lane.b32.xlu0 %v1437, 64
        %v1637 = vpop.permute.xlu0 %1636
        %1638 = vrot.lane.b32.xlu0 %v1438, 64
        %v1639 = vpop.permute.xlu0 %1638
        %1640 = vrot.lane.b32.xlu0 %v1439, 64
        %v1641 = vpop.permute.xlu0 %1640
        %1642 = vrot.lane.b32.xlu0 %v1440, 64
        %v1643 = vpop.permute.xlu0 %1642
        %1644 = vrot.lane.b32.xlu0 %v1441, 64
        %v1645 = vpop.permute.xlu0 %1644
        %1646 = vrot.lane.b32.xlu0 %v1442, 64
        %v1647 = vpop.permute.xlu0 %1646
        %1648 = vrot.lane.b32.xlu0 %v1443, 64
        %v1649 = vpop.permute.xlu0 %1648
        %1650 = vrot.lane.b32.xlu0 %v1444, 64
        %v1651 = vpop.permute.xlu0 %1650
        %1652 = vrot.lane.b32.xlu0 %v1445, 64
        %v1653 = vpop.permute.xlu0 %1652
        %1654 = vrot.lane.b32.xlu0 %v1446, 64
        %v1655 = vpop.permute.xlu0 %1654
        %1656 = vrot.lane.b32.xlu0 %v1447, 64
        %v1657 = vpop.permute.xlu0 %1656
        %1658 = vrot.lane.b32.xlu0 %v1448, 64
        %v1659 = vpop.permute.xlu0 %1658
        %1660 = vrot.lane.b32.xlu0 %v1449, 64
        %v1661 = vpop.permute.xlu0 %1660
        %1662 = vrot.lane.b32.xlu0 %v1450, 64
        %v1663 = vpop.permute.xlu0 %1662
        %1664 = vrot.lane.b32.xlu0 %v1451, 64
        %v1665 = vpop.permute.xlu0 %1664
        %1666 = vrot.lane.b32.xlu0 %v1452, 64
        %v1667 = vpop.permute.xlu0 %1666
        %1668 = vrot.lane.b32.xlu0 %v1453, 64
        %v1669 = vpop.permute.xlu0 %1668
        %1670 = vrot.lane.b32.xlu0 %v1454, 64
        %v1671 = vpop.permute.xlu0 %1670
        %1672 = vrot.lane.b32.xlu0 %v1455, 64
        %v1673 = vpop.permute.xlu0 %1672
        %1674 = vrot.lane.b32.xlu0 %v1456, 64
        %v1675 = vpop.permute.xlu0 %1674
        %1676 = vrot.lane.b32.xlu0 %v1457, 64
        %v1677 = vpop.permute.xlu0 %1676
        %1678 = vrot.lane.b32.xlu0 %v1458, 64
        %v1679 = vpop.permute.xlu0 %1678
        %1680 = vrot.lane.b32.xlu0 %v1459, 64
        %v1681 = vpop.permute.xlu0 %1680
        %1682 = vrot.lane.b32.xlu0 %v1460, 64
        %v1683 = vpop.permute.xlu0 %1682
        %1684 = vrot.lane.b32.xlu0 %v1461, 64
        %v1685 = vpop.permute.xlu0 %1684
        %vm1718 = vcmask 261120
        %v1719 = vsel %vm1718, %v1269, %v1495
        %v1720 = vsel %vm1718, %v1270, %v1497
        %v1721 = vsel %vm1718, %v1271, %v1499
        %v1722 = vsel %vm1718, %v1272, %v1501
        %v1723 = vsel %vm1718, %v1273, %v1503
        %v1724 = vsel %vm1718, %v1274, %v1505
        %v1725 = vsel %vm1718, %v1275, %v1507
        %v1726 = vsel %vm1718, %v1276, %v1509
        %v1727 = vsel %vm1718, %v1277, %v1511
        %v1728 = vsel %vm1718, %v1278, %v1513
        %v1729 = vsel %vm1718, %v1279, %v1515
        %v1730 = vsel %vm1718, %v1280, %v1517
        %v1731 = vsel %vm1718, %v1281, %v1519
        %v1732 = vsel %vm1718, %v1282, %v1521
        %v1733 = vsel %vm1718, %v1283, %v1523
        %v1734 = vsel %vm1718, %v1284, %v1525
        %v1735 = vsel %vm1718, %v1285, %v1527
        %v1736 = vsel %vm1718, %v1286, %v1529
        %v1737 = vsel %vm1718, %v1287, %v1531
        %v1738 = vsel %vm1718, %v1288, %v1533
        %v1739 = vsel %vm1718, %v1289, %v1535
        %v1740 = vsel %vm1718, %v1290, %v1537
        %v1741 = vsel %vm1718, %v1291, %v1539
        %v1742 = vsel %vm1718, %v1292, %v1541
        %v1743 = vsel %vm1718, %v1293, %v1543
        %v1744 = vsel %vm1718, %v1294, %v1545
        %v1745 = vsel %vm1718, %v1295, %v1547
        %v1746 = vsel %vm1718, %v1296, %v1549
        %v1747 = vsel %vm1718, %v1297, %v1551
        %v1748 = vsel %vm1718, %v1298, %v1553
        %v1749 = vsel %vm1718, %v1299, %v1555
        %v1750 = vsel %vm1718, %v1300, %v1557
        %vm1751 = vcmask 523264
        %v1752 = vsel %vm1751, %v1719, %v1623
        %v1753 = vsel %vm1751, %v1720, %v1625
        %v1754 = vsel %vm1751, %v1721, %v1627
        %v1755 = vsel %vm1751, %v1722, %v1629
        %v1756 = vsel %vm1751, %v1723, %v1631
        %v1757 = vsel %vm1751, %v1724, %v1633
        %v1758 = vsel %vm1751, %v1725, %v1635
        %v1759 = vsel %vm1751, %v1726, %v1637
        %v1760 = vsel %vm1751, %v1727, %v1639
        %v1761 = vsel %vm1751, %v1728, %v1641
        %v1762 = vsel %vm1751, %v1729, %v1643
        %v1763 = vsel %vm1751, %v1730, %v1645
        %v1764 = vsel %vm1751, %v1731, %v1647
        %v1765 = vsel %vm1751, %v1732, %v1649
        %v1766 = vsel %vm1751, %v1733, %v1651
        %v1767 = vsel %vm1751, %v1734, %v1653
        %v1768 = vsel %vm1751, %v1735, %v1655
        %v1769 = vsel %vm1751, %v1736, %v1657
        %v1770 = vsel %vm1751, %v1737, %v1659
        %v1771 = vsel %vm1751, %v1738, %v1661
        %v1772 = vsel %vm1751, %v1739, %v1663
        %v1773 = vsel %vm1751, %v1740, %v1665
        %v1774 = vsel %vm1751, %v1741, %v1667
        %v1775 = vsel %vm1751, %v1742, %v1669
        %v1776 = vsel %vm1751, %v1743, %v1671
        %v1777 = vsel %vm1751, %v1744, %v1673
        %v1778 = vsel %vm1751, %v1745, %v1675
        %v1779 = vsel %vm1751, %v1746, %v1677
        %v1780 = vsel %vm1751, %v1747, %v1679
        %v1781 = vsel %vm1751, %v1748, %v1681
        %v1782 = vsel %vm1751, %v1749, %v1683
        %v1783 = vsel %vm1751, %v1750, %v1685
        %v1784 = vpack.c.bf16 %v1753, %v1752
        %v1785 = vpack.c.bf16 %v1755, %v1754
        %v1786 = vpack.c.bf16 %v1757, %v1756
        %v1787 = vpack.c.bf16 %v1759, %v1758
        %v1788 = vpack.c.bf16 %v1761, %v1760
        %v1789 = vpack.c.bf16 %v1763, %v1762
        %v1790 = vpack.c.bf16 %v1765, %v1764
        %v1791 = vpack.c.bf16 %v1767, %v1766
        %v1792 = vpack.c.bf16 %v1769, %v1768
        %v1793 = vpack.c.bf16 %v1771, %v1770
        %v1794 = vpack.c.bf16 %v1773, %v1772
        %v1795 = vpack.c.bf16 %v1775, %v1774
        %v1796 = vpack.c.bf16 %v1777, %v1776
        %v1797 = vpack.c.bf16 %v1779, %v1778
        %v1798 = vpack.c.bf16 %v1781, %v1780
        %v1799 = vpack.c.bf16 %v1783, %v1782
        %v1800 = vld [vmem:[%s3] sm:$0xf]
        %v1801 = vld [vmem:[%s3 + $0x4] sm:$0xf]
        %v1802 = vld [vmem:[%s3 + $0x8] sm:$0xf]
        %v1803 = vld [vmem:[%s3 + $0xc] sm:$0xf]
        %v1804 = vld [vmem:[%s3 + $0x10] sm:$0xf]
        %v1805 = vld [vmem:[%s3 + $0x14] sm:$0xf]
        %v1806 = vld [vmem:[%s3 + $0x18] sm:$0xf]
        %v1807 = vld [vmem:[%s3 + $0x1c] sm:$0xf]
        %v1808 = vld [vmem:[%s3 + $0x20] sm:$0xf]
        %v1809 = vld [vmem:[%s3 + $0x24] sm:$0xf]
        %v1810 = vld [vmem:[%s3 + $0x28] sm:$0xf]
        %v1811 = vld [vmem:[%s3 + $0x2c] sm:$0xf]
        %v1824 = vunpack.c.l.b16 %v1800
        %v1825 = vunpack.c.l.b16 %v1801
        %v1826 = vunpack.c.l.b16 %v1802
        %v1827 = vunpack.c.l.b16 %v1803
        %v1828 = vunpack.c.l.b16 %v1804
        %v1829 = vunpack.c.l.b16 %v1805
        %v1830 = vunpack.c.l.b16 %v1806
        %v1831 = vunpack.c.l.b16 %v1807
        %v1832 = vunpack.c.l.b16 %v1808
        %v1833 = vunpack.c.l.b16 %v1809
        %v1834 = vunpack.c.l.b16 %v1810
        %v1835 = vunpack.c.l.b16 %v1811
        %v1836 = vpack.c.b16 %v1825, %v1824
        %v1837 = vpack.c.b16 %v1827, %v1826
        %v1838 = vpack.c.b16 %v1829, %v1828
        %v1839 = vpack.c.b16 %v1831, %v1830
        %v1840 = vpack.c.b16 %v1833, %v1832
        %v1841 = vpack.c.b16 %v1835, %v1834
        %vm1848 = vcmask 785408
        %v1850 = vsel %vm1848, %v1784, 0
        %v1853 = vsel %vm1848, %v1785, 0
        %v1856 = vsel %vm1848, %v1786, 0
        %v1859 = vsel %vm1848, %v1787, 0
        %v1862 = vsel %vm1848, %v1788, 0
        %v1865 = vsel %vm1848, %v1789, 0
        %v1868 = vsel %vm1848, %v1790, 0
        %v1871 = vsel %vm1848, %v1791, 0
        %v1874 = vsel %vm1848, %v1792, 0
        %v1877 = vsel %vm1848, %v1793, 0
        %v1880 = vsel %vm1848, %v1794, 0
        %v1883 = vsel %vm1848, %v1795, 0
        %v1886 = vsel %vm1848, %v1796, 0
        %v1889 = vsel %vm1848, %v1797, 0
        %v1892 = vsel %vm1848, %v1798, 0
        %v1895 = vsel %vm1848, %v1799, 0
        %1897 = vmatpush.bf16.msra.mxu0 0
        %1898 = vmatpush.bf16.msra.mxu0 0
        %1899 = vmatpush.bf16.msra.mxu0 %v1841
        %1900 = vmatpush.bf16.msra.mxu0 %v1840
        %1901 = vmatpush.bf16.msra.mxu0 %v1839
        %1902 = vmatpush.bf16.msra.mxu0 %v1838
        %1903 = vmatpush.bf16.msra.mxu0 %v1837
        %1904 = vmatpush.bf16.msra.mxu0 %v1836
        %1905 = vmatmul.bf16.gmra.mxu0 %v1850
        %v1906 = vpop.f32.mrf.mxu0
        %v1907 = vadd.f32 0.0, %v1906
        %v1908 = vpop.f32.mrf.mxu0
        %v1909 = vadd.f32 0.0, %v1908
        %1910 = vmatmul.bf16.gmra.mxu0 %v1853
        %v1911 = vpop.f32.mrf.mxu0
        %v1912 = vadd.f32 0.0, %v1911
        %v1913 = vpop.f32.mrf.mxu0
        %v1914 = vadd.f32 0.0, %v1913
        %1915 = vmatmul.bf16.gmra.mxu0 %v1856
        %v1916 = vpop.f32.mrf.mxu0
        %v1917 = vadd.f32 0.0, %v1916
        %v1918 = vpop.f32.mrf.mxu0
        %v1919 = vadd.f32 0.0, %v1918
        %1920 = vmatmul.bf16.gmra.mxu0 %v1859
        %v1921 = vpop.f32.mrf.mxu0
        %v1922 = vadd.f32 0.0, %v1921
        %v1923 = vpop.f32.mrf.mxu0
        %v1924 = vadd.f32 0.0, %v1923
        %1925 = vmatmul.bf16.gmra.mxu0 %v1862
        %v1926 = vpop.f32.mrf.mxu0
        %v1927 = vadd.f32 0.0, %v1926
        %v1928 = vpop.f32.mrf.mxu0
        %v1929 = vadd.f32 0.0, %v1928
        %1930 = vmatmul.bf16.gmra.mxu0 %v1865
        %v1931 = vpop.f32.mrf.mxu0
        %v1932 = vadd.f32 0.0, %v1931
        %v1933 = vpop.f32.mrf.mxu0
        %v1934 = vadd.f32 0.0, %v1933
        %1935 = vmatmul.bf16.gmra.mxu0 %v1868
        %v1936 = vpop.f32.mrf.mxu0
        %v1937 = vadd.f32 0.0, %v1936
        %v1938 = vpop.f32.mrf.mxu0
        %v1939 = vadd.f32 0.0, %v1938
        %1940 = vmatmul.bf16.gmra.mxu0 %v1871
        %v1941 = vpop.f32.mrf.mxu0
        %v1942 = vadd.f32 0.0, %v1941
        %v1943 = vpop.f32.mrf.mxu0
        %v1944 = vadd.f32 0.0, %v1943
        %1945 = vmatmul.bf16.gmra.mxu0 %v1874
        %v1946 = vpop.f32.mrf.mxu0
        %v1947 = vadd.f32 0.0, %v1946
        %v1948 = vpop.f32.mrf.mxu0
        %v1949 = vadd.f32 0.0, %v1948
        %1950 = vmatmul.bf16.gmra.mxu0 %v1877
        %v1951 = vpop.f32.mrf.mxu0
        %v1952 = vadd.f32 0.0, %v1951
        %v1953 = vpop.f32.mrf.mxu0
        %v1954 = vadd.f32 0.0, %v1953
        %1955 = vmatmul.bf16.gmra.mxu0 %v1880
        %v1956 = vpop.f32.mrf.mxu0
        %v1957 = vadd.f32 0.0, %v1956
        %v1958 = vpop.f32.mrf.mxu0
        %v1959 = vadd.f32 0.0, %v1958
        %1960 = vmatmul.bf16.gmra.mxu0 %v1883
        %v1961 = vpop.f32.mrf.mxu0
        %v1962 = vadd.f32 0.0, %v1961
        %v1963 = vpop.f32.mrf.mxu0
        %v1964 = vadd.f32 0.0, %v1963
        %1965 = vmatmul.bf16.gmra.mxu0 %v1886
        %v1966 = vpop.f32.mrf.mxu0
        %v1967 = vadd.f32 0.0, %v1966
        %v1968 = vpop.f32.mrf.mxu0
        %v1969 = vadd.f32 0.0, %v1968
        %1970 = vmatmul.bf16.gmra.mxu0 %v1889
        %v1971 = vpop.f32.mrf.mxu0
        %v1972 = vadd.f32 0.0, %v1971
        %v1973 = vpop.f32.mrf.mxu0
        %v1974 = vadd.f32 0.0, %v1973
        %1975 = vmatmul.bf16.gmra.mxu0 %v1892
        %v1976 = vpop.f32.mrf.mxu0
        %v1977 = vadd.f32 0.0, %v1976
        %v1978 = vpop.f32.mrf.mxu0
        %v1979 = vadd.f32 0.0, %v1978
        %1980 = vmatmul.bf16.gmra.mxu0 %v1895
        %v1981 = vpop.f32.mrf.mxu0
        %v1982 = vadd.f32 0.0, %v1981
        %v1983 = vpop.f32.mrf.mxu0
        %v1984 = vadd.f32 0.0, %v1983
        %1985 = vdwg.mxu0
        %v1986 = vsel %vm1076, 1, 0
        %v1987 = vsel %vm1077, 1, 0
        %v1988 = vsel %vm1078, 1, 0
        %v1989 = vsel %vm1079, 1, 0
        %v1990 = vsel %vm1080, 1, 0
        %v1991 = vsel %vm1081, 1, 0
        %v1992 = vsel %vm1082, 1, 0
        %v1993 = vsel %vm1083, 1, 0
        %v1994 = vsel %vm1084, 1, 0
        %v1995 = vsel %vm1085, 1, 0
        %v1996 = vsel %vm1086, 1, 0
        %v1997 = vsel %vm1087, 1, 0
        %v1998 = vsel %vm1088, 1, 0
        %v1999 = vsel %vm1089, 1, 0
        %v2000 = vsel %vm1090, 1, 0
        %v2001 = vsel %vm1091, 1, 0
        %v2002 = vsel %vm1092, 1, 0
        %v2003 = vsel %vm1093, 1, 0
        %v2004 = vsel %vm1094, 1, 0
        %v2005 = vsel %vm1095, 1, 0
        %v2006 = vsel %vm1096, 1, 0
        %v2007 = vsel %vm1097, 1, 0
        %v2008 = vsel %vm1098, 1, 0
        %v2009 = vsel %vm1099, 1, 0
        %v2010 = vsel %vm1100, 1, 0
        %v2011 = vsel %vm1101, 1, 0
        %v2012 = vsel %vm1102, 1, 0
        %v2013 = vsel %vm1103, 1, 0
        %v2014 = vsel %vm1104, 1, 0
        %v2015 = vsel %vm1105, 1, 0
        %v2016 = vsel %vm1106, 1, 0
        %v2017 = vsel %vm1107, 1, 0
        %vm2018 = vcmp.eq.s32.totalorder %v1986, 1
        %vm2019 = vcmp.eq.s32.totalorder %v1987, 1
        %vm2020 = vcmp.eq.s32.totalorder %v1988, 1
        %vm2021 = vcmp.eq.s32.totalorder %v1989, 1
        %vm2022 = vcmp.eq.s32.totalorder %v1990, 1
        %vm2023 = vcmp.eq.s32.totalorder %v1991, 1
        %vm2024 = vcmp.eq.s32.totalorder %v1992, 1
        %vm2025 = vcmp.eq.s32.totalorder %v1993, 1
        %vm2026 = vcmp.eq.s32.totalorder %v1994, 1
        %vm2027 = vcmp.eq.s32.totalorder %v1995, 1
        %vm2028 = vcmp.eq.s32.totalorder %v1996, 1
        %vm2029 = vcmp.eq.s32.totalorder %v1997, 1
        %vm2030 = vcmp.eq.s32.totalorder %v1998, 1
        %vm2031 = vcmp.eq.s32.totalorder %v1999, 1
        %vm2032 = vcmp.eq.s32.totalorder %v2000, 1
        %vm2033 = vcmp.eq.s32.totalorder %v2001, 1
        %vm2034 = vcmp.eq.s32.totalorder %v2002, 1
        %vm2035 = vcmp.eq.s32.totalorder %v2003, 1
        %vm2036 = vcmp.eq.s32.totalorder %v2004, 1
        %vm2037 = vcmp.eq.s32.totalorder %v2005, 1
        %vm2038 = vcmp.eq.s32.totalorder %v2006, 1
        %vm2039 = vcmp.eq.s32.totalorder %v2007, 1
        %vm2040 = vcmp.eq.s32.totalorder %v2008, 1
        %vm2041 = vcmp.eq.s32.totalorder %v2009, 1
        %vm2042 = vcmp.eq.s32.totalorder %v2010, 1
        %vm2043 = vcmp.eq.s32.totalorder %v2011, 1
        %vm2044 = vcmp.eq.s32.totalorder %v2012, 1
        %vm2045 = vcmp.eq.s32.totalorder %v2013, 1
        %vm2046 = vcmp.eq.s32.totalorder %v2014, 1
        %vm2047 = vcmp.eq.s32.totalorder %v2015, 1
        %vm2048 = vcmp.eq.s32.totalorder %v2016, 1
        %vm2049 = vcmp.eq.s32.totalorder %v2017, 1
        %v2050 = vsel %vm2018, %v1982, 0.0
        %v2051 = vsel %vm2019, %v1984, 0.0
        %v2052 = vsel %vm2020, %v1907, 0.0
        %v2053 = vsel %vm2021, %v1909, 0.0
        %v2054 = vsel %vm2022, %v1912, 0.0
        %v2055 = vsel %vm2023, %v1914, 0.0
        %v2056 = vsel %vm2024, %v1917, 0.0
        %v2057 = vsel %vm2025, %v1919, 0.0
        %v2058 = vsel %vm2026, %v1922, 0.0
        %v2059 = vsel %vm2027, %v1924, 0.0
        %v2060 = vsel %vm2028, %v1927, 0.0
        %v2061 = vsel %vm2029, %v1929, 0.0
        %v2062 = vsel %vm2030, %v1932, 0.0
        %v2063 = vsel %vm2031, %v1934, 0.0
        %v2064 = vsel %vm2032, %v1937, 0.0
        %v2065 = vsel %vm2033, %v1939, 0.0
        %v2066 = vsel %vm2034, %v1942, 0.0
        %v2067 = vsel %vm2035, %v1944, 0.0
        %v2068 = vsel %vm2036, %v1947, 0.0
        %v2069 = vsel %vm2037, %v1949, 0.0
        %v2070 = vsel %vm2038, %v1952, 0.0
        %v2071 = vsel %vm2039, %v1954, 0.0
        %v2072 = vsel %vm2040, %v1957, 0.0
        %v2073 = vsel %vm2041, %v1959, 0.0
        %v2074 = vsel %vm2042, %v1962, 0.0
        %v2075 = vsel %vm2043, %v1964, 0.0
        %v2076 = vsel %vm2044, %v1967, 0.0
        %v2077 = vsel %vm2045, %v1969, 0.0
        %v2078 = vsel %vm2046, %v1972, 0.0
        %v2079 = vsel %vm2047, %v1974, 0.0
        %v2080 = vsel %vm2048, %v1977, 0.0
        %v2081 = vsel %vm2049, %v1979, 0.0
        %2114 = vrot.lane.b32.xlu0 %v1907, 64
        %v2115 = vpop.permute.xlu0 %2114
        %2116 = vrot.lane.b32.xlu0 %v1909, 64
        %v2117 = vpop.permute.xlu0 %2116
        %2118 = vrot.lane.b32.xlu0 %v1912, 64
        %v2119 = vpop.permute.xlu0 %2118
        %2120 = vrot.lane.b32.xlu0 %v1914, 64
        %v2121 = vpop.permute.xlu0 %2120
        %2122 = vrot.lane.b32.xlu0 %v1917, 64
        %v2123 = vpop.permute.xlu0 %2122
        %2124 = vrot.lane.b32.xlu0 %v1919, 64
        %v2125 = vpop.permute.xlu0 %2124
        %2126 = vrot.lane.b32.xlu0 %v1922, 64
        %v2127 = vpop.permute.xlu0 %2126
        %2128 = vrot.lane.b32.xlu0 %v1924, 64
        %v2129 = vpop.permute.xlu0 %2128
        %2130 = vrot.lane.b32.xlu0 %v1927, 64
        %v2131 = vpop.permute.xlu0 %2130
        %2132 = vrot.lane.b32.xlu0 %v1929, 64
        %v2133 = vpop.permute.xlu0 %2132
        %2134 = vrot.lane.b32.xlu0 %v1932, 64
        %v2135 = vpop.permute.xlu0 %2134
        %2136 = vrot.lane.b32.xlu0 %v1934, 64
        %v2137 = vpop.permute.xlu0 %2136
        %2138 = vrot.lane.b32.xlu0 %v1937, 64
        %v2139 = vpop.permute.xlu0 %2138
        %2140 = vrot.lane.b32.xlu0 %v1939, 64
        %v2141 = vpop.permute.xlu0 %2140
        %2142 = vrot.lane.b32.xlu0 %v1942, 64
        %v2143 = vpop.permute.xlu0 %2142
        %2144 = vrot.lane.b32.xlu0 %v1944, 64
        %v2145 = vpop.permute.xlu0 %2144
        %2146 = vrot.lane.b32.xlu0 %v1947, 64
        %v2147 = vpop.permute.xlu0 %2146
        %2148 = vrot.lane.b32.xlu0 %v1949, 64
        %v2149 = vpop.permute.xlu0 %2148
        %2150 = vrot.lane.b32.xlu0 %v1952, 64
        %v2151 = vpop.permute.xlu0 %2150
        %2152 = vrot.lane.b32.xlu0 %v1954, 64
        %v2153 = vpop.permute.xlu0 %2152
        %2154 = vrot.lane.b32.xlu0 %v1957, 64
        %v2155 = vpop.permute.xlu0 %2154
        %2156 = vrot.lane.b32.xlu0 %v1959, 64
        %v2157 = vpop.permute.xlu0 %2156
        %2158 = vrot.lane.b32.xlu0 %v1962, 64
        %v2159 = vpop.permute.xlu0 %2158
        %2160 = vrot.lane.b32.xlu0 %v1964, 64
        %v2161 = vpop.permute.xlu0 %2160
        %2162 = vrot.lane.b32.xlu0 %v1967, 64
        %v2163 = vpop.permute.xlu0 %2162
        %2164 = vrot.lane.b32.xlu0 %v1969, 64
        %v2165 = vpop.permute.xlu0 %2164
        %2166 = vrot.lane.b32.xlu0 %v1972, 64
        %v2167 = vpop.permute.xlu0 %2166
        %2168 = vrot.lane.b32.xlu0 %v1974, 64
        %v2169 = vpop.permute.xlu0 %2168
        %2170 = vrot.lane.b32.xlu0 %v1977, 64
        %v2171 = vpop.permute.xlu0 %2170
        %2172 = vrot.lane.b32.xlu0 %v1979, 64
        %v2173 = vpop.permute.xlu0 %2172
        %2174 = vrot.lane.b32.xlu0 %v1982, 64
        %v2175 = vpop.permute.xlu0 %2174
        %2176 = vrot.lane.b32.xlu0 %v1984, 64
        %v2177 = vpop.permute.xlu0 %2176
        %v2210 = vsel %vm1108, 1, 0
        %v2211 = vsel %vm1109, 1, 0
        %v2212 = vsel %vm1110, 1, 0
        %v2213 = vsel %vm1111, 1, 0
        %v2214 = vsel %vm1112, 1, 0
        %v2215 = vsel %vm1113, 1, 0
        %v2216 = vsel %vm1114, 1, 0
        %v2217 = vsel %vm1115, 1, 0
        %v2218 = vsel %vm1116, 1, 0
        %v2219 = vsel %vm1117, 1, 0
        %v2220 = vsel %vm1118, 1, 0
        %v2221 = vsel %vm1119, 1, 0
        %v2222 = vsel %vm1120, 1, 0
        %v2223 = vsel %vm1121, 1, 0
        %v2224 = vsel %vm1122, 1, 0
        %v2225 = vsel %vm1123, 1, 0
        %v2226 = vsel %vm1124, 1, 0
        %v2227 = vsel %vm1125, 1, 0
        %v2228 = vsel %vm1126, 1, 0
        %v2229 = vsel %vm1127, 1, 0
        %v2230 = vsel %vm1128, 1, 0
        %v2231 = vsel %vm1129, 1, 0
        %v2232 = vsel %vm1130, 1, 0
        %v2233 = vsel %vm1131, 1, 0
        %v2234 = vsel %vm1132, 1, 0
        %v2235 = vsel %vm1133, 1, 0
        %v2236 = vsel %vm1134, 1, 0
        %v2237 = vsel %vm1135, 1, 0
        %v2238 = vsel %vm1136, 1, 0
        %v2239 = vsel %vm1137, 1, 0
        %v2240 = vsel %vm1138, 1, 0
        %v2241 = vsel %vm1139, 1, 0
        %vm2242 = vcmp.eq.s32.totalorder %v2210, 1
        %vm2243 = vcmp.eq.s32.totalorder %v2211, 1
        %vm2244 = vcmp.eq.s32.totalorder %v2212, 1
        %vm2245 = vcmp.eq.s32.totalorder %v2213, 1
        %vm2246 = vcmp.eq.s32.totalorder %v2214, 1
        %vm2247 = vcmp.eq.s32.totalorder %v2215, 1
        %vm2248 = vcmp.eq.s32.totalorder %v2216, 1
        %vm2249 = vcmp.eq.s32.totalorder %v2217, 1
        %vm2250 = vcmp.eq.s32.totalorder %v2218, 1
        %vm2251 = vcmp.eq.s32.totalorder %v2219, 1
        %vm2252 = vcmp.eq.s32.totalorder %v2220, 1
        %vm2253 = vcmp.eq.s32.totalorder %v2221, 1
        %vm2254 = vcmp.eq.s32.totalorder %v2222, 1
        %vm2255 = vcmp.eq.s32.totalorder %v2223, 1
        %vm2256 = vcmp.eq.s32.totalorder %v2224, 1
        %vm2257 = vcmp.eq.s32.totalorder %v2225, 1
        %vm2258 = vcmp.eq.s32.totalorder %v2226, 1
        %vm2259 = vcmp.eq.s32.totalorder %v2227, 1
        %vm2260 = vcmp.eq.s32.totalorder %v2228, 1
        %vm2261 = vcmp.eq.s32.totalorder %v2229, 1
        %vm2262 = vcmp.eq.s32.totalorder %v2230, 1
        %vm2263 = vcmp.eq.s32.totalorder %v2231, 1
        %vm2264 = vcmp.eq.s32.totalorder %v2232, 1
        %vm2265 = vcmp.eq.s32.totalorder %v2233, 1
        %vm2266 = vcmp.eq.s32.totalorder %v2234, 1
        %vm2267 = vcmp.eq.s32.totalorder %v2235, 1
        %vm2268 = vcmp.eq.s32.totalorder %v2236, 1
        %vm2269 = vcmp.eq.s32.totalorder %v2237, 1
        %vm2270 = vcmp.eq.s32.totalorder %v2238, 1
        %vm2271 = vcmp.eq.s32.totalorder %v2239, 1
        %vm2272 = vcmp.eq.s32.totalorder %v2240, 1
        %vm2273 = vcmp.eq.s32.totalorder %v2241, 1
        %v2274 = vsel %vm2242, %v2119, 0.0
        %v2275 = vsel %vm2243, %v2121, 0.0
        %v2276 = vsel %vm2244, %v2123, 0.0
        %v2277 = vsel %vm2245, %v2125, 0.0
        %v2278 = vsel %vm2246, %v2127, 0.0
        %v2279 = vsel %vm2247, %v2129, 0.0
        %v2280 = vsel %vm2248, %v2131, 0.0
        %v2281 = vsel %vm2249, %v2133, 0.0
        %v2282 = vsel %vm2250, %v2135, 0.0
        %v2283 = vsel %vm2251, %v2137, 0.0
        %v2284 = vsel %vm2252, %v2139, 0.0
        %v2285 = vsel %vm2253, %v2141, 0.0
        %v2286 = vsel %vm2254, %v2143, 0.0
        %v2287 = vsel %vm2255, %v2145, 0.0
        %v2288 = vsel %vm2256, %v2147, 0.0
        %v2289 = vsel %vm2257, %v2149, 0.0
        %v2290 = vsel %vm2258, %v2151, 0.0
        %v2291 = vsel %vm2259, %v2153, 0.0
        %v2292 = vsel %vm2260, %v2155, 0.0
        %v2293 = vsel %vm2261, %v2157, 0.0
        %v2294 = vsel %vm2262, %v2159, 0.0
        %v2295 = vsel %vm2263, %v2161, 0.0
        %v2296 = vsel %vm2264, %v2163, 0.0
        %v2297 = vsel %vm2265, %v2165, 0.0
        %v2298 = vsel %vm2266, %v2167, 0.0
        %v2299 = vsel %vm2267, %v2169, 0.0
        %v2300 = vsel %vm2268, %v2171, 0.0
        %v2301 = vsel %vm2269, %v2173, 0.0
        %v2302 = vsel %vm2270, %v2175, 0.0
        %v2303 = vsel %vm2271, %v2177, 0.0
        %v2304 = vsel %vm2272, %v2115, 0.0
        %v2305 = vsel %vm2273, %v2117, 0.0
        %2306 = vrot.lane.b32.xlu0 %v1907, 96
        %v2307 = vpop.permute.xlu0 %2306
        %2308 = vrot.lane.b32.xlu0 %v1909, 96
        %v2309 = vpop.permute.xlu0 %2308
        %2310 = vrot.lane.b32.xlu0 %v1912, 96
        %v2311 = vpop.permute.xlu0 %2310
        %2312 = vrot.lane.b32.xlu0 %v1914, 96
        %v2313 = vpop.permute.xlu0 %2312
        %2314 = vrot.lane.b32.xlu0 %v1917, 96
        %v2315 = vpop.permute.xlu0 %2314
        %2316 = vrot.lane.b32.xlu0 %v1919, 96
        %v2317 = vpop.permute.xlu0 %2316
        %2318 = vrot.lane.b32.xlu0 %v1922, 96
        %v2319 = vpop.permute.xlu0 %2318
        %2320 = vrot.lane.b32.xlu0 %v1924, 96
        %v2321 = vpop.permute.xlu0 %2320
        %2322 = vrot.lane.b32.xlu0 %v1927, 96
        %v2323 = vpop.permute.xlu0 %2322
        %2324 = vrot.lane.b32.xlu0 %v1929, 96
        %v2325 = vpop.permute.xlu0 %2324
        %2326 = vrot.lane.b32.xlu0 %v1932, 96
        %v2327 = vpop.permute.xlu0 %2326
        %2328 = vrot.lane.b32.xlu0 %v1934, 96
        %v2329 = vpop.permute.xlu0 %2328
        %2330 = vrot.lane.b32.xlu0 %v1937, 96
        %v2331 = vpop.permute.xlu0 %2330
        %2332 = vrot.lane.b32.xlu0 %v1939, 96
        %v2333 = vpop.permute.xlu0 %2332
        %2334 = vrot.lane.b32.xlu0 %v1942, 96
        %v2335 = vpop.permute.xlu0 %2334
        %2336 = vrot.lane.b32.xlu0 %v1944, 96
        %v2337 = vpop.permute.xlu0 %2336
        %2338 = vrot.lane.b32.xlu0 %v1947, 96
        %v2339 = vpop.permute.xlu0 %2338
        %2340 = vrot.lane.b32.xlu0 %v1949, 96
        %v2341 = vpop.permute.xlu0 %2340
        %2342 = vrot.lane.b32.xlu0 %v1952, 96
        %v2343 = vpop.permute.xlu0 %2342
        %2344 = vrot.lane.b32.xlu0 %v1954, 96
        %v2345 = vpop.permute.xlu0 %2344
        %2346 = vrot.lane.b32.xlu0 %v1957, 96
        %v2347 = vpop.permute.xlu0 %2346
        %2348 = vrot.lane.b32.xlu0 %v1959, 96
        %v2349 = vpop.permute.xlu0 %2348
        %2350 = vrot.lane.b32.xlu0 %v1962, 96
        %v2351 = vpop.permute.xlu0 %2350
        %2352 = vrot.lane.b32.xlu0 %v1964, 96
        %v2353 = vpop.permute.xlu0 %2352
        %2354 = vrot.lane.b32.xlu0 %v1967, 96
        %v2355 = vpop.permute.xlu0 %2354
        %2356 = vrot.lane.b32.xlu0 %v1969, 96
        %v2357 = vpop.permute.xlu0 %2356
        %2358 = vrot.lane.b32.xlu0 %v1972, 96
        %v2359 = vpop.permute.xlu0 %2358
        %2360 = vrot.lane.b32.xlu0 %v1974, 96
        %v2361 = vpop.permute.xlu0 %2360
        %2362 = vrot.lane.b32.xlu0 %v1977, 96
        %v2363 = vpop.permute.xlu0 %2362
        %2364 = vrot.lane.b32.xlu0 %v1979, 96
        %v2365 = vpop.permute.xlu0 %2364
        %2366 = vrot.lane.b32.xlu0 %v1982, 96
        %v2367 = vpop.permute.xlu0 %2366
        %2368 = vrot.lane.b32.xlu0 %v1984, 96
        %v2369 = vpop.permute.xlu0 %2368
        %v2402 = vadd.f32 %v2050, %v2307
        %v2403 = vadd.f32 %v2051, %v2309
        %v2404 = vadd.f32 %v2052, %v2311
        %v2405 = vadd.f32 %v2053, %v2313
        %v2406 = vadd.f32 %v2054, %v2315
        %v2407 = vadd.f32 %v2055, %v2317
        %v2408 = vadd.f32 %v2056, %v2319
        %v2409 = vadd.f32 %v2057, %v2321
        %v2410 = vadd.f32 %v2058, %v2323
        %v2411 = vadd.f32 %v2059, %v2325
        %v2412 = vadd.f32 %v2060, %v2327
        %v2413 = vadd.f32 %v2061, %v2329
        %v2414 = vadd.f32 %v2062, %v2331
        %v2415 = vadd.f32 %v2063, %v2333
        %v2416 = vadd.f32 %v2064, %v2335
        %v2417 = vadd.f32 %v2065, %v2337
        %v2418 = vadd.f32 %v2066, %v2339
        %v2419 = vadd.f32 %v2067, %v2341
        %v2420 = vadd.f32 %v2068, %v2343
        %v2421 = vadd.f32 %v2069, %v2345
        %v2422 = vadd.f32 %v2070, %v2347
        %v2423 = vadd.f32 %v2071, %v2349
        %v2424 = vadd.f32 %v2072, %v2351
        %v2425 = vadd.f32 %v2073, %v2353
        %v2426 = vadd.f32 %v2074, %v2355
        %v2427 = vadd.f32 %v2075, %v2357
        %v2428 = vadd.f32 %v2076, %v2359
        %v2429 = vadd.f32 %v2077, %v2361
        %v2430 = vadd.f32 %v2078, %v2363
        %v2431 = vadd.f32 %v2079, %v2365
        %v2432 = vadd.f32 %v2080, %v2367
        %v2433 = vadd.f32 %v2081, %v2369
        %v2434 = vadd.f32 %v2402, %v2274
        %v2435 = vadd.f32 %v2403, %v2275
        %v2436 = vadd.f32 %v2404, %v2276
        %v2437 = vadd.f32 %v2405, %v2277
        %v2438 = vadd.f32 %v2406, %v2278
        %v2439 = vadd.f32 %v2407, %v2279
        %v2440 = vadd.f32 %v2408, %v2280
        %v2441 = vadd.f32 %v2409, %v2281
        %v2442 = vadd.f32 %v2410, %v2282
        %v2443 = vadd.f32 %v2411, %v2283
        %v2444 = vadd.f32 %v2412, %v2284
        %v2445 = vadd.f32 %v2413, %v2285
        %v2446 = vadd.f32 %v2414, %v2286
        %v2447 = vadd.f32 %v2415, %v2287
        %v2448 = vadd.f32 %v2416, %v2288
        %v2449 = vadd.f32 %v2417, %v2289
        %v2450 = vadd.f32 %v2418, %v2290
        %v2451 = vadd.f32 %v2419, %v2291
        %v2452 = vadd.f32 %v2420, %v2292
        %v2453 = vadd.f32 %v2421, %v2293
        %v2454 = vadd.f32 %v2422, %v2294
        %v2455 = vadd.f32 %v2423, %v2295
        %v2456 = vadd.f32 %v2424, %v2296
        %v2457 = vadd.f32 %v2425, %v2297
        %v2458 = vadd.f32 %v2426, %v2298
        %v2459 = vadd.f32 %v2427, %v2299
        %v2460 = vadd.f32 %v2428, %v2300
        %v2461 = vadd.f32 %v2429, %v2301
        %v2462 = vadd.f32 %v2430, %v2302
        %v2463 = vadd.f32 %v2431, %v2303
        %v2464 = vadd.f32 %v2432, %v2304
        %v2465 = vadd.f32 %v2433, %v2305
        %v2466 = vld [vmem:[%s4] sm:$0x1]
        %v2468 = vperm.slane %v2466, 0
        %v2470 = vadd.f32 %v2434, %v2468
        %v2471 = vadd.f32 %v2435, %v2468
        %v2472 = vadd.f32 %v2436, %v2468
        %v2473 = vadd.f32 %v2437, %v2468
        %v2474 = vadd.f32 %v2438, %v2468
        %v2475 = vadd.f32 %v2439, %v2468
        %v2476 = vadd.f32 %v2440, %v2468
        %v2477 = vadd.f32 %v2441, %v2468
        %v2478 = vadd.f32 %v2442, %v2468
        %v2479 = vadd.f32 %v2443, %v2468
        %v2480 = vadd.f32 %v2444, %v2468
        %v2481 = vadd.f32 %v2445, %v2468
        %v2482 = vadd.f32 %v2446, %v2468
        %v2483 = vadd.f32 %v2447, %v2468
        %v2484 = vadd.f32 %v2448, %v2468
        %v2485 = vadd.f32 %v2449, %v2468
        %v2486 = vadd.f32 %v2450, %v2468
        %v2487 = vadd.f32 %v2451, %v2468
        %v2488 = vadd.f32 %v2452, %v2468
        %v2489 = vadd.f32 %v2453, %v2468
        %v2490 = vadd.f32 %v2454, %v2468
        %v2491 = vadd.f32 %v2455, %v2468
        %v2492 = vadd.f32 %v2456, %v2468
        %v2493 = vadd.f32 %v2457, %v2468
        %v2494 = vadd.f32 %v2458, %v2468
        %v2495 = vadd.f32 %v2459, %v2468
        %v2496 = vadd.f32 %v2460, %v2468
        %v2497 = vadd.f32 %v2461, %v2468
        %v2498 = vadd.f32 %v2462, %v2468
        %v2499 = vadd.f32 %v2463, %v2468
        %v2500 = vadd.f32 %v2464, %v2468
        %v2501 = vadd.f32 %v2465, %v2468
        %v2502 = vmax.f32 %v2470, 0.0
        %v2503 = vmax.f32 %v2471, 0.0
        %v2504 = vmax.f32 %v2472, 0.0
        %v2505 = vmax.f32 %v2473, 0.0
        %v2506 = vmax.f32 %v2474, 0.0
        %v2507 = vmax.f32 %v2475, 0.0
        %v2508 = vmax.f32 %v2476, 0.0
        %v2509 = vmax.f32 %v2477, 0.0
        %v2510 = vmax.f32 %v2478, 0.0
        %v2511 = vmax.f32 %v2479, 0.0
        %v2512 = vmax.f32 %v2480, 0.0
        %v2513 = vmax.f32 %v2481, 0.0
        %v2514 = vmax.f32 %v2482, 0.0
        %v2515 = vmax.f32 %v2483, 0.0
        %v2516 = vmax.f32 %v2484, 0.0
        %v2517 = vmax.f32 %v2485, 0.0
        %v2518 = vmax.f32 %v2486, 0.0
        %v2519 = vmax.f32 %v2487, 0.0
        %v2520 = vmax.f32 %v2488, 0.0
        %v2521 = vmax.f32 %v2489, 0.0
        %v2522 = vmax.f32 %v2490, 0.0
        %v2523 = vmax.f32 %v2491, 0.0
        %v2524 = vmax.f32 %v2492, 0.0
        %v2525 = vmax.f32 %v2493, 0.0
        %v2526 = vmax.f32 %v2494, 0.0
        %v2527 = vmax.f32 %v2495, 0.0
        %v2528 = vmax.f32 %v2496, 0.0
        %v2529 = vmax.f32 %v2497, 0.0
        %v2530 = vmax.f32 %v2498, 0.0
        %v2531 = vmax.f32 %v2499, 0.0
        %v2532 = vmax.f32 %v2500, 0.0
        %v2533 = vmax.f32 %v2501, 0.0
        %v2534 = vpack.c.bf16 %v2503, %v2502
        %v2535 = vpack.c.bf16 %v2505, %v2504
        %v2536 = vpack.c.bf16 %v2507, %v2506
        %v2537 = vpack.c.bf16 %v2509, %v2508
        %v2538 = vpack.c.bf16 %v2511, %v2510
        %v2539 = vpack.c.bf16 %v2513, %v2512
        %v2540 = vpack.c.bf16 %v2515, %v2514
        %v2541 = vpack.c.bf16 %v2517, %v2516
        %v2542 = vpack.c.bf16 %v2519, %v2518
        %v2543 = vpack.c.bf16 %v2521, %v2520
        %v2544 = vpack.c.bf16 %v2523, %v2522
        %v2545 = vpack.c.bf16 %v2525, %v2524
        %v2546 = vpack.c.bf16 %v2527, %v2526
        %v2547 = vpack.c.bf16 %v2529, %v2528
        %v2548 = vpack.c.bf16 %v2531, %v2530
        %v2549 = vpack.c.bf16 %v2533, %v2532
        %v2550 = vld [vmem:[%s5] sm:$0xf]
        %v2551 = vld [vmem:[%s5 + $0x4] sm:$0xf]
        %v2552 = vld [vmem:[%s5 + $0x8] sm:$0xf]
        %v2553 = vld [vmem:[%s5 + $0xc] sm:$0xf]
        %v2554 = vld [vmem:[%s6] sm:$0x1]
        %v2556 = vperm.slane %v2554, 0
        %v2562 = vunpack.c.l.b16 %v2550
        %v2563 = vunpack.c.l.b16 %v2551
        %v2564 = vunpack.c.l.b16 %v2552
        %v2565 = vunpack.c.l.b16 %v2553
        %v2566 = vpack.c.b16 %v2563, %v2562
        %v2567 = vpack.c.b16 %v2565, %v2564
        %v2571 = vsel %vm1718, %v2534, 0
        %v2574 = vsel %vm1718, %v2535, 0
        %v2577 = vsel %vm1718, %v2536, 0
        %v2580 = vsel %vm1718, %v2537, 0
        %v2583 = vsel %vm1718, %v2538, 0
        %v2586 = vsel %vm1718, %v2539, 0
        %v2589 = vsel %vm1718, %v2540, 0
        %v2592 = vsel %vm1718, %v2541, 0
        %v2595 = vsel %vm1718, %v2542, 0
        %v2598 = vsel %vm1718, %v2543, 0
        %v2601 = vsel %vm1718, %v2544, 0
        %v2604 = vsel %vm1718, %v2545, 0
        %v2607 = vsel %vm1718, %v2546, 0
        %v2610 = vsel %vm1718, %v2547, 0
        %v2613 = vsel %vm1718, %v2548, 0
        %v2616 = vsel %vm1718, %v2549, 0
        %2618 = vmatpush.bf16.msra.mxu0 0
        %2619 = vmatpush.bf16.msra.mxu0 0
        %2620 = vmatpush.bf16.msra.mxu0 0
        %2621 = vmatpush.bf16.msra.mxu0 0
        %2622 = vmatpush.bf16.msra.mxu0 0
        %2623 = vmatpush.bf16.msra.mxu0 0
        %2624 = vmatpush.bf16.msra.mxu0 %v2567
        %2625 = vmatpush.bf16.msra.mxu0 %v2566
        %2626 = vmatmul.bf16.gmra.mxu0 %v2571
        %v2627 = vpop.f32.mrf.mxu0
        %v2628 = vadd.f32 %v2556, %v2627
        %v2629 = vpop.f32.mrf.mxu0
        %v2630 = vadd.f32 %v2556, %v2629
        %2631 = vmatmul.bf16.gmra.mxu0 %v2574
        %v2632 = vpop.f32.mrf.mxu0
        %v2633 = vadd.f32 %v2556, %v2632
        %v2634 = vpop.f32.mrf.mxu0
        %v2635 = vadd.f32 %v2556, %v2634
        %2636 = vmatmul.bf16.gmra.mxu0 %v2577
        %v2637 = vpop.f32.mrf.mxu0
        %v2638 = vadd.f32 %v2556, %v2637
        %v2639 = vpop.f32.mrf.mxu0
        %v2640 = vadd.f32 %v2556, %v2639
        %2641 = vmatmul.bf16.gmra.mxu0 %v2580
        %v2642 = vpop.f32.mrf.mxu0
        %v2643 = vadd.f32 %v2556, %v2642
        %v2644 = vpop.f32.mrf.mxu0
        %v2645 = vadd.f32 %v2556, %v2644
        %2646 = vmatmul.bf16.gmra.mxu0 %v2583
        %v2647 = vpop.f32.mrf.mxu0
        %v2648 = vadd.f32 %v2556, %v2647
        %v2649 = vpop.f32.mrf.mxu0
        %v2650 = vadd.f32 %v2556, %v2649
        %2651 = vmatmul.bf16.gmra.mxu0 %v2586
        %v2652 = vpop.f32.mrf.mxu0
        %v2653 = vadd.f32 %v2556, %v2652
        %v2654 = vpop.f32.mrf.mxu0
        %v2655 = vadd.f32 %v2556, %v2654
        %2656 = vmatmul.bf16.gmra.mxu0 %v2589
        %v2657 = vpop.f32.mrf.mxu0
        %v2658 = vadd.f32 %v2556, %v2657
        %v2659 = vpop.f32.mrf.mxu0
        %v2660 = vadd.f32 %v2556, %v2659
        %2661 = vmatmul.bf16.gmra.mxu0 %v2592
        %v2662 = vpop.f32.mrf.mxu0
        %v2663 = vadd.f32 %v2556, %v2662
        %v2664 = vpop.f32.mrf.mxu0
        %v2665 = vadd.f32 %v2556, %v2664
        %2666 = vmatmul.bf16.gmra.mxu0 %v2595
        %v2667 = vpop.f32.mrf.mxu0
        %v2668 = vadd.f32 %v2556, %v2667
        %v2669 = vpop.f32.mrf.mxu0
        %v2670 = vadd.f32 %v2556, %v2669
        %2671 = vmatmul.bf16.gmra.mxu0 %v2598
        %v2672 = vpop.f32.mrf.mxu0
        %v2673 = vadd.f32 %v2556, %v2672
        %v2674 = vpop.f32.mrf.mxu0
        %v2675 = vadd.f32 %v2556, %v2674
        %2676 = vmatmul.bf16.gmra.mxu0 %v2601
        %v2677 = vpop.f32.mrf.mxu0
        %v2678 = vadd.f32 %v2556, %v2677
        %v2679 = vpop.f32.mrf.mxu0
        %v2680 = vadd.f32 %v2556, %v2679
        %2681 = vmatmul.bf16.gmra.mxu0 %v2604
        %v2682 = vpop.f32.mrf.mxu0
        %v2683 = vadd.f32 %v2556, %v2682
        %v2684 = vpop.f32.mrf.mxu0
        %v2685 = vadd.f32 %v2556, %v2684
        %2686 = vmatmul.bf16.gmra.mxu0 %v2607
        %v2687 = vpop.f32.mrf.mxu0
        %v2688 = vadd.f32 %v2556, %v2687
        %v2689 = vpop.f32.mrf.mxu0
        %v2690 = vadd.f32 %v2556, %v2689
        %2691 = vmatmul.bf16.gmra.mxu0 %v2610
        %v2692 = vpop.f32.mrf.mxu0
        %v2693 = vadd.f32 %v2556, %v2692
        %v2694 = vpop.f32.mrf.mxu0
        %v2695 = vadd.f32 %v2556, %v2694
        %2696 = vmatmul.bf16.gmra.mxu0 %v2613
        %v2697 = vpop.f32.mrf.mxu0
        %v2698 = vadd.f32 %v2556, %v2697
        %v2699 = vpop.f32.mrf.mxu0
        %v2700 = vadd.f32 %v2556, %v2699
        %2701 = vmatmul.bf16.gmra.mxu0 %v2616
        %v2702 = vpop.f32.mrf.mxu0
        %v2703 = vadd.f32 %v2556, %v2702
        %v2704 = vpop.f32.mrf.mxu0
        %v2705 = vadd.f32 %v2556, %v2704
        %2706 = vdwg.mxu0
        %v2707 = vunpack.c.l.bf16 %v278
        %v2708 = vunpack.c.l.bf16 %v279
        %v2709 = vunpack.c.l.bf16 %v280
        %v2710 = vunpack.c.l.bf16 %v281
        %v2711 = vunpack.c.l.bf16 %v282
        %v2712 = vunpack.c.l.bf16 %v283
        %v2713 = vunpack.c.l.bf16 %v284
        %v2714 = vunpack.c.l.bf16 %v285
        %v2715 = vunpack.c.l.bf16 %v286
        %v2716 = vunpack.c.l.bf16 %v287
        %v2717 = vunpack.c.l.bf16 %v288
        %v2718 = vunpack.c.l.bf16 %v289
        %v2719 = vunpack.c.l.bf16 %v290
        %v2720 = vunpack.c.l.bf16 %v291
        %v2721 = vunpack.c.l.bf16 %v292
        %v2722 = vunpack.c.l.bf16 %v293
        %v2723 = vunpack.c.l.bf16 %v294
        %v2724 = vunpack.c.l.bf16 %v295
        %v2725 = vunpack.c.l.bf16 %v296
        %v2726 = vunpack.c.l.bf16 %v297
        %v2727 = vunpack.c.l.bf16 %v298
        %v2728 = vunpack.c.l.bf16 %v299
        %v2729 = vunpack.c.l.bf16 %v300
        %v2730 = vunpack.c.l.bf16 %v301
        %v2731 = vunpack.c.l.bf16 %v302
        %v2732 = vunpack.c.l.bf16 %v303
        %v2733 = vunpack.c.l.bf16 %v304
        %v2734 = vunpack.c.l.bf16 %v305
        %v2735 = vunpack.c.l.bf16 %v306
        %v2736 = vunpack.c.l.bf16 %v307
        %v2737 = vunpack.c.l.bf16 %v308
        %v2738 = vunpack.c.l.bf16 %v309
        %v2739 = vadd.f32 %v2628, %v2707
        %v2740 = vadd.f32 %v2630, %v2708
        %v2741 = vadd.f32 %v2633, %v2709
        %v2742 = vadd.f32 %v2635, %v2710
        %v2743 = vadd.f32 %v2638, %v2711
        %v2744 = vadd.f32 %v2640, %v2712
        %v2745 = vadd.f32 %v2643, %v2713
        %v2746 = vadd.f32 %v2645, %v2714
        %v2747 = vadd.f32 %v2648, %v2715
        %v2748 = vadd.f32 %v2650, %v2716
        %v2749 = vadd.f32 %v2653, %v2717
        %v2750 = vadd.f32 %v2655, %v2718
        %v2751 = vadd.f32 %v2658, %v2719
        %v2752 = vadd.f32 %v2660, %v2720
        %v2753 = vadd.f32 %v2663, %v2721
        %v2754 = vadd.f32 %v2665, %v2722
        %v2755 = vadd.f32 %v2668, %v2723
        %v2756 = vadd.f32 %v2670, %v2724
        %v2757 = vadd.f32 %v2673, %v2725
        %v2758 = vadd.f32 %v2675, %v2726
        %v2759 = vadd.f32 %v2678, %v2727
        %v2760 = vadd.f32 %v2680, %v2728
        %v2761 = vadd.f32 %v2683, %v2729
        %v2762 = vadd.f32 %v2685, %v2730
        %v2763 = vadd.f32 %v2688, %v2731
        %v2764 = vadd.f32 %v2690, %v2732
        %v2765 = vadd.f32 %v2693, %v2733
        %v2766 = vadd.f32 %v2695, %v2734
        %v2767 = vadd.f32 %v2698, %v2735
        %v2768 = vadd.f32 %v2700, %v2736
        %v2769 = vadd.f32 %v2703, %v2737
        %v2770 = vadd.f32 %v2705, %v2738
        %v2771 = vmax.f32 %v2739, 0.0
        %v2772 = vmax.f32 %v2740, 0.0
        %v2773 = vmax.f32 %v2741, 0.0
        %v2774 = vmax.f32 %v2742, 0.0
        %v2775 = vmax.f32 %v2743, 0.0
        %v2776 = vmax.f32 %v2744, 0.0
        %v2777 = vmax.f32 %v2745, 0.0
        %v2778 = vmax.f32 %v2746, 0.0
        %v2779 = vmax.f32 %v2747, 0.0
        %v2780 = vmax.f32 %v2748, 0.0
        %v2781 = vmax.f32 %v2749, 0.0
        %v2782 = vmax.f32 %v2750, 0.0
        %v2783 = vmax.f32 %v2751, 0.0
        %v2784 = vmax.f32 %v2752, 0.0
        %v2785 = vmax.f32 %v2753, 0.0
        %v2786 = vmax.f32 %v2754, 0.0
        %v2787 = vmax.f32 %v2755, 0.0
        %v2788 = vmax.f32 %v2756, 0.0
        %v2789 = vmax.f32 %v2757, 0.0
        %v2790 = vmax.f32 %v2758, 0.0
        %v2791 = vmax.f32 %v2759, 0.0
        %v2792 = vmax.f32 %v2760, 0.0
        %v2793 = vmax.f32 %v2761, 0.0
        %v2794 = vmax.f32 %v2762, 0.0
        %v2795 = vmax.f32 %v2763, 0.0
        %v2796 = vmax.f32 %v2764, 0.0
        %v2797 = vmax.f32 %v2765, 0.0
        %v2798 = vmax.f32 %v2766, 0.0
        %v2799 = vmax.f32 %v2767, 0.0
        %v2800 = vmax.f32 %v2768, 0.0
        %v2801 = vmax.f32 %v2769, 0.0
        %v2802 = vmax.f32 %v2770, 0.0
        %2803 = vst [vmem:[%s271] sm:$0xff] %v2771
        %2804 = vst [vmem:[%s271 + $0x8] sm:$0xff] %v2772
        %2805 = vst [vmem:[%s271 + $0x10] sm:$0xff] %v2773
        %2806 = vst [vmem:[%s271 + $0x18] sm:$0xff] %v2774
        %2807 = vst [vmem:[%s271 + $0x20] sm:$0xff] %v2775
        %2808 = vst [vmem:[%s271 + $0x28] sm:$0xff] %v2776
        %2809 = vst [vmem:[%s271 + $0x30] sm:$0xff] %v2777
        %2810 = vst [vmem:[%s271 + $0x38] sm:$0xff] %v2778
        %2811 = vst [vmem:[%s271 + $0x40] sm:$0xff] %v2779
        %2812 = vst [vmem:[%s271 + $0x48] sm:$0xff] %v2780
        %2813 = vst [vmem:[%s271 + $0x50] sm:$0xff] %v2781
        %2814 = vst [vmem:[%s271 + $0x58] sm:$0xff] %v2782
        %2815 = vst [vmem:[%s271 + $0x60] sm:$0xff] %v2783
        %2816 = vst [vmem:[%s271 + $0x68] sm:$0xff] %v2784
        %2817 = vst [vmem:[%s271 + $0x70] sm:$0xff] %v2785
        %2818 = vst [vmem:[%s271 + $0x78] sm:$0xff] %v2786
        %2819 = vst [vmem:[%s271 + $0x80] sm:$0xff] %v2787
        %2820 = vst [vmem:[%s271 + $0x88] sm:$0xff] %v2788
        %2821 = vst [vmem:[%s271 + $0x90] sm:$0xff] %v2789
        %2822 = vst [vmem:[%s271 + $0x98] sm:$0xff] %v2790
        %2823 = vst [vmem:[%s271 + $0xa0] sm:$0xff] %v2791
        %2824 = vst [vmem:[%s271 + $0xa8] sm:$0xff] %v2792
        %2825 = vst [vmem:[%s271 + $0xb0] sm:$0xff] %v2793
        %2826 = vst [vmem:[%s271 + $0xb8] sm:$0xff] %v2794
        %2827 = vst [vmem:[%s271 + $0xc0] sm:$0xff] %v2795
        %2828 = vst [vmem:[%s271 + $0xc8] sm:$0xff] %v2796
        %2829 = vst [vmem:[%s271 + $0xd0] sm:$0xff] %v2797
        %2830 = vst [vmem:[%s271 + $0xd8] sm:$0xff] %v2798
        %2831 = vst [vmem:[%s271 + $0xe0] sm:$0xff] %v2799
        %2832 = vst [vmem:[%s271 + $0xe8] sm:$0xff] %v2800
        %2833 = vst [vmem:[%s271 + $0xf0] sm:$0xff] %v2801
        %2834 = vst [vmem:[%s271 + $0xf8] sm:$0xff] %v2802
        %s2835 = sand.u32 %s181, 1
        %s2836 = scalar_lea.sflag [#allocation3], %s2835
        %s2837 = sand.u32 %s181, 1
        %s2838 = smul.addr %s2837, 256
        %s2839 = scalar_lea.vmem [#allocation2], %s2838
        // Predicated region
        $region49: #{bottleneck_pallas.1} parent=47 // pred_check
          %p2840 = pneg %p191
        $region50: #{bottleneck_pallas.1} parent=47 // pred_check_branch
          %2842 = sbr.rel (%p2840) target = $region52
        $region51: #{bottleneck_pallas.1} parent=47 // pred_region
          %2844 = vsyncadd %s2836, 0
          %s2845 = smul.addr %s21, 32
          %s2846 = smul.addr %s2845, 8
          %s2847 = scalar_lea.hbm %s7, %s2846
          %s2848 = sshll.u32 %s2839, 4
          %s2849 = int_to_ptr.vmem [resolvable:$true] %s2848
          %s2850 = sshll.u32 %s2847, 4
          %s2851 = int_to_ptr.hbm [resolvable:$true] %s2850
          %2856 = dma.vmem_to_hbm [thread:$0]  %s2849, 4096, %s2851, %s2836, 128, 128, 8
        $region52: #{bottleneck_pallas.1} parent=47 // pred_fallthru
          _
      $region48: #{bottleneck_pallas.1} parent=5 // pred_fallthru
        _
      %p2857 = scmp.le.s32.totalorder 2, %s16
      // Predicated region
      $region53: #{bottleneck_pallas.1} parent=5 // pred_check
        %p2858 = pneg %p2857
      $region54: #{bottleneck_pallas.1} parent=5 // pred_check_branch
        %2860 = sbr.rel (%p2858) target = $region56
      $region55: #{bottleneck_pallas.1} parent=5 // pred_region
        %s2861 = ssub.s32 %s16, 2
        // Predicated region
        $region57: #{bottleneck_pallas.1} parent=55 // pred_check
          %p2862 = pneg %p197
        $region58: #{bottleneck_pallas.1} parent=55 // pred_check_branch
          %2864 = sbr.rel (%p2862) target = $region60
        $region59: #{bottleneck_pallas.1} parent=55 // pred_region
          %s2865 = sand.u32 %s182, 1
          %s2866 = scalar_lea.sflag [#allocation3], %s2865
          %s2867 = sand.u32 %s182, 1
          %s2868 = smul.addr %s2867, 256
          %s2869 = scalar_lea.vmem [#allocation2], %s2868
          %2871 = dma.done %s2866, 4096
        $region60: #{bottleneck_pallas.1} parent=55 // pred_fallthru
          _
      $region56: #{bottleneck_pallas.1} parent=5 // pred_fallthru
        _
    $region6: #{bottleneck_pallas.1} parent=1 // loop_footer
      %s20 = sadd.s32 1, %s16
    $region7: #{bottleneck_pallas.1} parent=1 // loop_footer_branch
      %15 = sbr.rel target = $region3
    $region8: #{bottleneck_pallas.1} parent=1 // loop_exit
      _
    %2872 = vsyncpa [#allocation3], 1
    %s2873 = scalar_lea.sflag [#allocation3], 1
    %2874 = vsyncpa %s2873, 1

</llo_original>
